<compile_context>
chip_gen: v6e
topology: v6e:2x2x1
jax: 0.10.0
libtpu: 0.0.40
codegen_flags: <defaults>
</compile_context>

<pallas_src>
import functools

import jax
import jax.numpy as jnp
from jax.experimental import pallas as pl
from jax.experimental.pallas import tpu as pltpu


def _basic_block_kernel(xp_ref, w1_ref, s1_ref, b1_ref,
                        w2_ref, s2_ref, b2_ref,
                        out_ref, mid_ref, *, img_rows, num_imgs):
    # xp_ref : (1, M, W*Cin)   f32 slab: num_imgs images, each (H+2) rows with
    #                          a zero row above and below its H data rows.
    # w1_ref : (3, W*Cin, W*Cout) banded conv1 weights (dy-indexed), compute dt
    # s1/b1  : (1, W*Cout)     folded BN1 scale/shift, tiled across W (f32)
    # w2_ref : (3, W*Cout, W*Cout) banded conv2 weights
    # s2/b2  : (1, W*Cout)
    # out_ref: (1, M, W*Cout)  lane-dense output slab; image j's H valid rows
    #                          live at rows [j*(H+2), j*(H+2)+H), rest is junk.
    # mid_ref: VMEM (M, W*Cout) scratch in compute dtype (conv2 staging + halos)
    M = xp_ref.shape[1]
    WC = out_ref.shape[2]
    Mo = M - 2                      # number of rows actually convolved
    cdt = mid_ref.dtype

    xp = xp_ref[0]                  # (M, W*Cin), f32
    xb = xp.astype(cdt)             # matmul-operand dtype (single cast)

    # ---- conv1: 3 banded MXU matmuls over the whole image stack ----
    acc = jnp.dot(xb[0:Mo, :], w1_ref[0], preferred_element_type=jnp.float32)
    acc = acc + jnp.dot(xb[1:Mo + 1, :], w1_ref[1],
                        preferred_element_type=jnp.float32)
    acc = acc + jnp.dot(xb[2:Mo + 2, :], w1_ref[2],
                        preferred_element_type=jnp.float32)

    # ---- BN1 (folded) + ReLU, f32 ----
    mid = jnp.maximum(acc * s1_ref[...] + b1_ref[...], 0.0)      # (Mo, WC)

    # ---- stage intermediate in VMEM for conv2 ----
    # Layout: mid_ref[1 + r] = mid[r]; then the per-image top/bottom zero
    # halos for conv2 are exactly the slab end rows plus the pair of rows at
    # every image boundary (which were cross-image garbage rows of `mid`).
    # Zeroed every grid step -> correct under megacore ("parallel") sharding.
    mid_ref[1:M - 1, :] = mid.astype(cdt)
    zrow = jnp.zeros((1, WC), cdt)
    mid_ref[0:1, :] = zrow
    mid_ref[M - 1:M, :] = zrow
    for j in range(1, num_imgs):    # static (trace-time) loop
        mid_ref[j * img_rows - 1: j * img_rows + 1, :] = jnp.zeros((2, WC), cdt)

    # ---- conv2: 3 banded MXU matmuls on the staged intermediate ----
    acc2 = jnp.dot(mid_ref[0:Mo, :], w2_ref[0],
                   preferred_element_type=jnp.float32)
    acc2 = acc2 + jnp.dot(mid_ref[1:Mo + 1, :], w2_ref[1],
                          preferred_element_type=jnp.float32)
    acc2 = acc2 + jnp.dot(mid_ref[2:Mo + 2, :], w2_ref[2],
                          preferred_element_type=jnp.float32)

    # ---- BN2 (folded) + residual (exact f32 input, reused from slab) + ReLU ----
    out = acc2 * s2_ref[...] + b2_ref[...] + xp[1:Mo + 1, :]
    out_ref[0, 0:Mo, :] = jnp.maximum(out, 0.0).astype(out_ref.dtype)
    out_ref[0, Mo:M, :] = jnp.zeros((2, WC), out_ref.dtype)


def _banded_weights(w, W):
    """Fold dx taps + channel contraction into banded matrices.

    w: (3, 3, Cin, Cout) HWIO  ->  (3, W*Cin, W*Cout), one band matrix per dy.
    Band entry [(wo+dx-1)*Cin + i, wo*Cout + o] = w[dy, dx, i, o]; taps that
    fall outside [0, W) (the conv's W-padding) are simply absent.
    """
    bands = []
    for dy in range(3):
        m = 0.0
        for dx in range(3):
            m = m + jnp.kron(jnp.eye(W, W, k=1 - dx, dtype=w.dtype), w[dy, dx])
        bands.append(m)
    return jnp.stack(bands)


def basic_block(x, w1, s1, b1, w2, s2, b2, *,
                compute_dtype=jnp.bfloat16, images_per_step=None):
    """x: (N, H, W, C); w*: (3,3,C,C) HWIO; s*/b*: (C,) folded eval-mode BN.

    compute_dtype: dtype of the MXU matmul operands (default bf16; f32
    accumulation, BN and residual always in f32).
    images_per_step: images folded into one grid step (default: N//2 -> two
    grid steps, megacore- and pipeline-friendly).
    """
    N, H, W, Cin = x.shape
    Cout = w1.shape[-1]
    assert w1.shape == (3, 3, Cin, Cout) and w2.shape == (3, 3, Cout, Cout)
    assert Cin == Cout, "residual add requires inplanes == planes"

    cdt = jnp.dtype(compute_dtype)
    out_dt = jnp.dtype(x.dtype)
    WCin, WC = W * Cin, W * Cout
    img_rows = H + 2

    if images_per_step is None:
        nb = max(1, N // 2)
        while N % nb:               # largest divisor of N that is <= N//2
            nb -= 1
        images_per_step = nb
    NB = int(images_per_step)
    assert N % NB == 0, "batch must be divisible by images_per_step"
    G = N // NB                     # grid steps
    M = NB * img_rows               # matmul M rows per step (incl. pad rows)

    # ---- glue (plain JAX, outside the kernel) ----
    # Lane-dense activation slab with one zero row above/below each image.
    # Kept in f32 so the in-kernel residual add is exact; cast to the compute
    # dtype only at the matmul operands.
    xp = jnp.pad(x.reshape(N, H, WCin).astype(jnp.float32),
                 ((0, 0), (1, 1), (0, 0)))
    xp = xp.reshape(G, M, WCin)
    wb1 = _banded_weights(w1, W).astype(cdt)          # (3, W*Cin, W*Cout)
    wb2 = _banded_weights(w2, W).astype(cdt)          # (3, W*Cout, W*Cout)
    s1_t = jnp.tile(s1, W).reshape(1, WC).astype(jnp.float32)
    b1_t = jnp.tile(b1, W).reshape(1, WC).astype(jnp.float32)
    s2_t = jnp.tile(s2, W).reshape(1, WC).astype(jnp.float32)
    b2_t = jnp.tile(b2, W).reshape(1, WC).astype(jnp.float32)

    # Advisory cost estimate for XLA's scheduler around the custom call.
    flops = 2 * N * H * (3 * WCin * WC + 3 * WC * WC)
    bytes_accessed = int(xp.size * 4
                         + (wb1.size + wb2.size) * cdt.itemsize
                         + 4 * WC * 4
                         + G * M * WC * out_dt.itemsize)
    cost = pl.CostEstimate(flops=flops, transcendentals=0,
                           bytes_accessed=bytes_accessed)

    # VMEM footprint: double-buffered inputs/outputs + weights + scratch,
    # with generous headroom (instead of a blanket 32 MiB), capped at v7x's
    # 64 MiB physical VMEM.
    vmem_bytes = 2 * (M * WCin * 4                                  # xp block
                      + (3 * WCin * WC + 3 * WC * WC) * cdt.itemsize  # weights
                      + 4 * WC * 4                                  # BN vecs
                      + M * WC * out_dt.itemsize)                   # out block
    vmem_bytes += M * WC * cdt.itemsize                             # scratch
    vmem_limit = int(min(64 * 1024 * 1024,
                         max(8 * 1024 * 1024, 2 * vmem_bytes)))

    kernel = functools.partial(_basic_block_kernel,
                               img_rows=img_rows, num_imgs=NB)

    out = pl.pallas_call(
        kernel,
        out_shape=jax.ShapeDtypeStruct((G, M, WC), out_dt),
        grid_spec=pltpu.PrefetchScalarGridSpec(
            num_scalar_prefetch=0,
            grid=(G,),
            in_specs=[
                pl.BlockSpec((1, M, WCin), lambda g: (g, 0, 0)),
                pl.BlockSpec((3, WCin, WC), lambda g: (0, 0, 0)),
                pl.BlockSpec((1, WC), lambda g: (0, 0)),
                pl.BlockSpec((1, WC), lambda g: (0, 0)),
                pl.BlockSpec((3, WC, WC), lambda g: (0, 0, 0)),
                pl.BlockSpec((1, WC), lambda g: (0, 0)),
                pl.BlockSpec((1, WC), lambda g: (0, 0)),
            ],
            out_specs=pl.BlockSpec((1, M, WC), lambda g: (g, 0, 0)),
            scratch_shapes=[pltpu.VMEM((M, WC), cdt)],
        ),
        compiler_params=pltpu.CompilerParams(
            dimension_semantics=("parallel",),
            vmem_limit_bytes=vmem_limit,
        ),
        cost_estimate=cost,
    )(xp, wb1, s1_t, b1_t, wb2, s2_t, b2_t)

    # Image i's H valid output rows live at slab rows [i*(H+2), i*(H+2)+H).
    out = out.reshape(N, img_rows, WC)[:, :H, :]
    return out.reshape(N, H, W, Cout)


def _ref_forward(x, w1, s1, b1, w2, s2, b2):
    """Pure-JAX reference (NHWC / HWIO) mirroring the PyTorch forward."""
    def conv(a, w):
        return jax.lax.conv_general_dilated(
            a, w, window_strides=(1, 1), padding=((1, 1), (1, 1)),
            dimension_numbers=("NHWC", "HWIO", "NHWC"))
    out = conv(x, w1) * s1 + b1
    out = jnp.maximum(out, 0.0)
    out = conv(out, w2) * s2 + b2
    out = jnp.maximum(out + x, 0.0)
    return out


if __name__ == "__main__":
    key = jax.random.PRNGKey(0)
    N, H, W, C = 8, 16, 16, 8        # inplanes = planes = 8 -> W*C = 128 lanes
    ks = jax.random.split(key, 11)
    eps = 1e-5                        # PyTorch BatchNorm default eps

    x = jax.random.normal(ks[0], (N, H, W, C), jnp.float32)
    w1 = jax.random.normal(ks[1], (3, 3, C, C), jnp.float32) * 0.1
    w2 = jax.random.normal(ks[2], (3, 3, C, C), jnp.float32) * 0.1

    gamma1 = jax.random.uniform(ks[3], (C,), jnp.float32, 0.5, 1.5)
    beta1 = jax.random.normal(ks[4], (C,), jnp.float32) * 0.1
    mean1 = jax.random.normal(ks[5], (C,), jnp.float32) * 0.1
    var1 = jax.random.uniform(ks[6], (C,), jnp.float32, 0.5, 1.5)
    gamma2 = jax.random.uniform(ks[7], (C,), jnp.float32, 0.5, 1.5)
    beta2 = jax.random.normal(ks[8], (C,), jnp.float32) * 0.1
    mean2 = jax.random.normal(ks[9], (C,), jnp.float32) * 0.1
    var2 = jax.random.uniform(ks[10], (C,), jnp.float32, 0.5, 1.5)

    # Fold eval-mode BatchNorm into per-channel scale/shift (glue, plain JAX).
    s1 = gamma1 / jnp.sqrt(var1 + eps)
    b1 = beta1 - mean1 * s1
    s2 = gamma2 / jnp.sqrt(var2 + eps)
    b2 = beta2 - mean2 * s2

    ref = _ref_forward(x, w1, s1, b1, w2, s2, b2)

    # f32 matmul operands, default batching (4 images/step, grid=(2,)):
    # strict check against the PyTorch-equivalent reference.
    out = jax.block_until_ready(
        basic_block(x, w1, s1, b1, w2, s2, b2, compute_dtype=jnp.float32))
    assert out.shape == (N, H, W, C) and out.dtype == jnp.float32
    assert jnp.allclose(out, ref, atol=1e-3, rtol=1e-3), \
        f"f32 max abs err {jnp.max(jnp.abs(out - ref))}"

    # Single-image-per-step path (no inter-image halos), strict check.
    out1 = jax.block_until_ready(
        basic_block(x, w1, s1, b1, w2, s2, b2,
                    compute_dtype=jnp.float32, images_per_step=1))
    assert jnp.allclose(out1, ref, atol=1e-3, rtol=1e-3), \
        f"NB=1 max abs err {jnp.max(jnp.abs(out1 - ref))}"

    # Default path: bf16 matmul operands, f32 accumulation / BN / residual.
    out_bf16 = jax.block_until_ready(basic_block(x, w1, s1, b1, w2, s2, b2))
    assert jnp.allclose(out_bf16, ref, atol=1e-1, rtol=1e-1), \
        f"bf16 max abs err {jnp.max(jnp.abs(out_bf16 - ref))}"

    print("KERNEL_OK")
</pallas_src>

<mosaic_0001>
module attributes {stable_mosaic.version = 11 : i64} {
  func.func @_basic_block_kernel(%arg0: i32, %arg1: memref<1x72x128xf32, #tpu.memory_space<vmem>>, %arg2: memref<3x128x128xf32, #tpu.memory_space<vmem>>, %arg3: memref<1x128xf32, #tpu.memory_space<vmem>>, %arg4: memref<1x128xf32, #tpu.memory_space<vmem>>, %arg5: memref<3x128x128xf32, #tpu.memory_space<vmem>>, %arg6: memref<1x128xf32, #tpu.memory_space<vmem>>, %arg7: memref<1x128xf32, #tpu.memory_space<vmem>>, %arg8: memref<1x72x128xf32, #tpu.memory_space<vmem>>, %arg9: memref<72x128xf32, #tpu.memory_space<vmem>>) attributes {dimension_semantics = [#tpu.dimension_semantics<parallel>], iteration_bounds = array<i64: 2>, scalar_prefetch = 0 : i64, scratch_operands = 1 : i64, tpu.core_type = #tpu.core_type<tc>, window_params = [{transform_indices = @transform_0, window_bounds = array<i64: 1, 72, 128>}, {pipeline_mode = #tpu.pipeline_mode<synchronous>, transform_indices = @transform_1, window_bounds = array<i64: 3, 128, 128>}, {pipeline_mode = #tpu.pipeline_mode<synchronous>, transform_indices = @transform_2, window_bounds = array<i64: 1, 128>}, {pipeline_mode = #tpu.pipeline_mode<synchronous>, transform_indices = @transform_3, window_bounds = array<i64: 1, 128>}, {pipeline_mode = #tpu.pipeline_mode<synchronous>, transform_indices = @transform_4, window_bounds = array<i64: 3, 128, 128>}, {pipeline_mode = #tpu.pipeline_mode<synchronous>, transform_indices = @transform_5, window_bounds = array<i64: 1, 128>}, {pipeline_mode = #tpu.pipeline_mode<synchronous>, transform_indices = @transform_6, window_bounds = array<i64: 1, 128>}, {transform_indices = @transform_7, window_bounds = array<i64: 1, 72, 128>}]} {
    %c0 = arith.constant 0 : index
    %c0_0 = arith.constant 0 : index
    %c0_1 = arith.constant 0 : index
    %0 = vector.load %arg1[%c0, %c0_0, %c0_1] : memref<1x72x128xf32, #tpu.memory_space<vmem>>, vector<1x72x128xf32>
    %1 = vector.shape_cast %0 : vector<1x72x128xf32> to vector<72x128xf32>
    %2 = vector.extract_strided_slice %1 {offsets = [0, 0], sizes = [70, 128], strides = [1, 1]} : vector<72x128xf32> to vector<70x128xf32>
    %c0_2 = arith.constant 0 : index
    %c0_3 = arith.constant 0 : index
    %c0_4 = arith.constant 0 : index
    %3 = vector.load %arg2[%c0_2, %c0_3, %c0_4] : memref<3x128x128xf32, #tpu.memory_space<vmem>>, vector<1x128x128xf32>
    %4 = vector.shape_cast %3 : vector<1x128x128xf32> to vector<128x128xf32>
    %cst = arith.constant dense<0.000000e+00> : vector<70x128xf32>
    %5 = tpu.matmul %2, %4, %cst {dimension_numbers = #tpu.dot_dimension_numbers<[1], [0], [0], [1], [0, 0, 1, 1], [], []>} : vector<70x128xf32>, vector<128x128xf32>, vector<70x128xf32> -> vector<70x128xf32>
    %6 = vector.extract_strided_slice %1 {offsets = [1, 0], sizes = [70, 128], strides = [1, 1]} : vector<72x128xf32> to vector<70x128xf32>
    %c1 = arith.constant 1 : index
    %c0_5 = arith.constant 0 : index
    %c0_6 = arith.constant 0 : index
    %7 = vector.load %arg2[%c1, %c0_5, %c0_6] : memref<3x128x128xf32, #tpu.memory_space<vmem>>, vector<1x128x128xf32>
    %8 = vector.shape_cast %7 : vector<1x128x128xf32> to vector<128x128xf32>
    %cst_7 = arith.constant dense<0.000000e+00> : vector<70x128xf32>
    %9 = tpu.matmul %6, %8, %cst_7 {dimension_numbers = #tpu.dot_dimension_numbers<[1], [0], [0], [1], [0, 0, 1, 1], [], []>} : vector<70x128xf32>, vector<128x128xf32>, vector<70x128xf32> -> vector<70x128xf32>
    %10 = arith.addf %5, %9 : vector<70x128xf32>
    %11 = vector.extract_strided_slice %1 {offsets = [2, 0], sizes = [70, 128], strides = [1, 1]} : vector<72x128xf32> to vector<70x128xf32>
    %c2 = arith.constant 2 : index
    %c0_8 = arith.constant 0 : index
    %c0_9 = arith.constant 0 : index
    %12 = vector.load %arg2[%c2, %c0_8, %c0_9] : memref<3x128x128xf32, #tpu.memory_space<vmem>>, vector<1x128x128xf32>
    %13 = vector.shape_cast %12 : vector<1x128x128xf32> to vector<128x128xf32>
    %cst_10 = arith.constant dense<0.000000e+00> : vector<70x128xf32>
    %14 = tpu.matmul %11, %13, %cst_10 {dimension_numbers = #tpu.dot_dimension_numbers<[1], [0], [0], [1], [0, 0, 1, 1], [], []>} : vector<70x128xf32>, vector<128x128xf32>, vector<70x128xf32> -> vector<70x128xf32>
    %15 = arith.addf %10, %14 : vector<70x128xf32>
    %c0_11 = arith.constant 0 : index
    %c0_12 = arith.constant 0 : index
    %16 = vector.load %arg3[%c0_11, %c0_12] : memref<1x128xf32, #tpu.memory_space<vmem>>, vector<1x128xf32>
    %17 = vector.broadcast %16 : vector<1x128xf32> to vector<70x128xf32>
    %18 = arith.mulf %15, %17 : vector<70x128xf32>
    %c0_13 = arith.constant 0 : index
    %c0_14 = arith.constant 0 : index
    %19 = vector.load %arg4[%c0_13, %c0_14] : memref<1x128xf32, #tpu.memory_space<vmem>>, vector<1x128xf32>
    %20 = vector.broadcast %19 : vector<1x128xf32> to vector<70x128xf32>
    %21 = arith.addf %18, %20 : vector<70x128xf32>
    %cst_15 = arith.constant 0.000000e+00 : f32
    %22 = vector.broadcast %cst_15 : f32 to vector<70x128xf32>
    %23 = arith.maximumf %21, %22 : vector<70x128xf32>
    %c1_16 = arith.constant 1 : index
    %c0_17 = arith.constant 0 : index
    %24 = vector.load %arg9[%c1_16, %c0_17] : memref<72x128xf32, #tpu.memory_space<vmem>>, vector<70x128xf32>
    tpu.vector_store %arg9[%c1_16, %c0_17], %23 {strides = array<i32>} : memref<72x128xf32, #tpu.memory_space<vmem>>, vector<70x128xf32>,
    %cst_18 = arith.constant 0.000000e+00 : f32
    %25 = vector.broadcast %cst_18 : f32 to vector<1x128xf32>
    %c0_19 = arith.constant 0 : index
    %c0_20 = arith.constant 0 : index
    %26 = vector.load %arg9[%c0_19, %c0_20] : memref<72x128xf32, #tpu.memory_space<vmem>>, vector<1x128xf32>
    tpu.vector_store %arg9[%c0_19, %c0_20], %25 {strides = array<i32>} : memref<72x128xf32, #tpu.memory_space<vmem>>, vector<1x128xf32>,
    %c71 = arith.constant 71 : index
    %c0_21 = arith.constant 0 : index
    %27 = vector.load %arg9[%c71, %c0_21] : memref<72x128xf32, #tpu.memory_space<vmem>>, vector<1x128xf32>
    tpu.vector_store %arg9[%c71, %c0_21], %25 {strides = array<i32>} : memref<72x128xf32, #tpu.memory_space<vmem>>, vector<1x128xf32>,
    %cst_22 = arith.constant 0.000000e+00 : f32
    %28 = vector.broadcast %cst_22 : f32 to vector<2x128xf32>
    %c17 = arith.constant 17 : index
    %c0_23 = arith.constant 0 : index
    %29 = vector.load %arg9[%c17, %c0_23] : memref<72x128xf32, #tpu.memory_space<vmem>>, vector<2x128xf32>
    tpu.vector_store %arg9[%c17, %c0_23], %28 {strides = array<i32>} : memref<72x128xf32, #tpu.memory_space<vmem>>, vector<2x128xf32>,
    %cst_24 = arith.constant 0.000000e+00 : f32
    %30 = vector.broadcast %cst_24 : f32 to vector<2x128xf32>
    %c35 = arith.constant 35 : index
    %c0_25 = arith.constant 0 : index
    %31 = vector.load %arg9[%c35, %c0_25] : memref<72x128xf32, #tpu.memory_space<vmem>>, vector<2x128xf32>
    tpu.vector_store %arg9[%c35, %c0_25], %30 {strides = array<i32>} : memref<72x128xf32, #tpu.memory_space<vmem>>, vector<2x128xf32>,
    %cst_26 = arith.constant 0.000000e+00 : f32
    %32 = vector.broadcast %cst_26 : f32 to vector<2x128xf32>
    %c53 = arith.constant 53 : index
    %c0_27 = arith.constant 0 : index
    %33 = vector.load %arg9[%c53, %c0_27] : memref<72x128xf32, #tpu.memory_space<vmem>>, vector<2x128xf32>
    tpu.vector_store %arg9[%c53, %c0_27], %32 {strides = array<i32>} : memref<72x128xf32, #tpu.memory_space<vmem>>, vector<2x128xf32>,
    %c0_28 = arith.constant 0 : index
    %c0_29 = arith.constant 0 : index
    %34 = vector.load %arg9[%c0_28, %c0_29] : memref<72x128xf32, #tpu.memory_space<vmem>>, vector<70x128xf32>
    %c0_30 = arith.constant 0 : index
    %c0_31 = arith.constant 0 : index
    %c0_32 = arith.constant 0 : index
    %35 = vector.load %arg5[%c0_30, %c0_31, %c0_32] : memref<3x128x128xf32, #tpu.memory_space<vmem>>, vector<1x128x128xf32>
    %36 = vector.shape_cast %35 : vector<1x128x128xf32> to vector<128x128xf32>
    %cst_33 = arith.constant dense<0.000000e+00> : vector<70x128xf32>
    %37 = tpu.matmul %34, %36, %cst_33 {dimension_numbers = #tpu.dot_dimension_numbers<[1], [0], [0], [1], [0, 0, 1, 1], [], []>} : vector<70x128xf32>, vector<128x128xf32>, vector<70x128xf32> -> vector<70x128xf32>
    %c1_34 = arith.constant 1 : index
    %c0_35 = arith.constant 0 : index
    %38 = vector.load %arg9[%c1_34, %c0_35] : memref<72x128xf32, #tpu.memory_space<vmem>>, vector<70x128xf32>
    %c1_36 = arith.constant 1 : index
    %c0_37 = arith.constant 0 : index
    %c0_38 = arith.constant 0 : index
    %39 = vector.load %arg5[%c1_36, %c0_37, %c0_38] : memref<3x128x128xf32, #tpu.memory_space<vmem>>, vector<1x128x128xf32>
    %40 = vector.shape_cast %39 : vector<1x128x128xf32> to vector<128x128xf32>
    %cst_39 = arith.constant dense<0.000000e+00> : vector<70x128xf32>
    %41 = tpu.matmul %38, %40, %cst_39 {dimension_numbers = #tpu.dot_dimension_numbers<[1], [0], [0], [1], [0, 0, 1, 1], [], []>} : vector<70x128xf32>, vector<128x128xf32>, vector<70x128xf32> -> vector<70x128xf32>
    %42 = arith.addf %37, %41 : vector<70x128xf32>
    %c2_40 = arith.constant 2 : index
    %c0_41 = arith.constant 0 : index
    %43 = vector.load %arg9[%c2_40, %c0_41] : memref<72x128xf32, #tpu.memory_space<vmem>>, vector<70x128xf32>
    %c2_42 = arith.constant 2 : index
    %c0_43 = arith.constant 0 : index
    %c0_44 = arith.constant 0 : index
    %44 = vector.load %arg5[%c2_42, %c0_43, %c0_44] : memref<3x128x128xf32, #tpu.memory_space<vmem>>, vector<1x128x128xf32>
    %45 = vector.shape_cast %44 : vector<1x128x128xf32> to vector<128x128xf32>
    %cst_45 = arith.constant dense<0.000000e+00> : vector<70x128xf32>
    %46 = tpu.matmul %43, %45, %cst_45 {dimension_numbers = #tpu.dot_dimension_numbers<[1], [0], [0], [1], [0, 0, 1, 1], [], []>} : vector<70x128xf32>, vector<128x128xf32>, vector<70x128xf32> -> vector<70x128xf32>
    %47 = arith.addf %42, %46 : vector<70x128xf32>
    %c0_46 = arith.constant 0 : index
    %c0_47 = arith.constant 0 : index
    %48 = vector.load %arg6[%c0_46, %c0_47] : memref<1x128xf32, #tpu.memory_space<vmem>>, vector<1x128xf32>
    %49 = vector.broadcast %48 : vector<1x128xf32> to vector<70x128xf32>
    %50 = arith.mulf %47, %49 : vector<70x128xf32>
    %c0_48 = arith.constant 0 : index
    %c0_49 = arith.constant 0 : index
    %51 = vector.load %arg7[%c0_48, %c0_49] : memref<1x128xf32, #tpu.memory_space<vmem>>, vector<1x128xf32>
    %52 = vector.broadcast %51 : vector<1x128xf32> to vector<70x128xf32>
    %53 = arith.addf %50, %52 : vector<70x128xf32>
    %54 = vector.extract_strided_slice %1 {offsets = [1, 0], sizes = [70, 128], strides = [1, 1]} : vector<72x128xf32> to vector<70x128xf32>
    %55 = arith.addf %53, %54 : vector<70x128xf32>
    %cst_50 = arith.constant 0.000000e+00 : f32
    %56 = vector.broadcast %cst_50 : f32 to vector<70x128xf32>
    %57 = arith.maximumf %55, %56 : vector<70x128xf32>
    %c0_51 = arith.constant 0 : index
    %c0_52 = arith.constant 0 : index
    %c0_53 = arith.constant 0 : index
    %58 = vector.load %arg8[%c0_51, %c0_52, %c0_53] : memref<1x72x128xf32, #tpu.memory_space<vmem>>, vector<1x70x128xf32>
    %59 = vector.shape_cast %58 : vector<1x70x128xf32> to vector<70x128xf32>
    %60 = vector.shape_cast %57 : vector<70x128xf32> to vector<1x70x128xf32>
    tpu.vector_store %arg8[%c0_51, %c0_52, %c0_53], %60 {strides = array<i32>} : memref<1x72x128xf32, #tpu.memory_space<vmem>>, vector<1x70x128xf32>,
    %cst_54 = arith.constant 0.000000e+00 : f32
    %61 = vector.broadcast %cst_54 : f32 to vector<2x128xf32>
    %c0_55 = arith.constant 0 : index
    %c70 = arith.constant 70 : index
    %c0_56 = arith.constant 0 : index
    %62 = vector.load %arg8[%c0_55, %c70, %c0_56] : memref<1x72x128xf32, #tpu.memory_space<vmem>>, vector<1x2x128xf32>
    %63 = vector.shape_cast %62 : vector<1x2x128xf32> to vector<2x128xf32>
    %64 = vector.shape_cast %61 : vector<2x128xf32> to vector<1x2x128xf32>
    tpu.vector_store %arg8[%c0_55, %c70, %c0_56], %64 {strides = array<i32>} : memref<1x72x128xf32, #tpu.memory_space<vmem>>, vector<1x2x128xf32>,
    return
  }
  func.func @transform_0(%arg0: i32) -> (i32, i32, i32) {
    %c0_i32 = arith.constant 0 : i32
    %c0_i32_0 = arith.constant 0 : i32
    %c0_i32_1 = arith.constant 0 : i32
    return %arg0, %c0_i32, %c0_i32_0 : i32, i32, i32
  }
  func.func @transform_1(%arg0: i32) -> (i32, i32, i32) {
    %c0_i32 = arith.constant 0 : i32
    %c0_i32_0 = arith.constant 0 : i32
    %c0_i32_1 = arith.constant 0 : i32
    %c0_i32_2 = arith.constant 0 : i32
    return %c0_i32, %c0_i32_0, %c0_i32_1 : i32, i32, i32
  }
  func.func @transform_2(%arg0: i32) -> (i32, i32) {
    %c0_i32 = arith.constant 0 : i32
    %c0_i32_0 = arith.constant 0 : i32
    %c0_i32_1 = arith.constant 0 : i32
    return %c0_i32, %c0_i32_0 : i32, i32
  }
  func.func @transform_3(%arg0: i32) -> (i32, i32) {
    %c0_i32 = arith.constant 0 : i32
    %c0_i32_0 = arith.constant 0 : i32
    %c0_i32_1 = arith.constant 0 : i32
    return %c0_i32, %c0_i32_0 : i32, i32
  }
  func.func @transform_4(%arg0: i32) -> (i32, i32, i32) {
    %c0_i32 = arith.constant 0 : i32
    %c0_i32_0 = arith.constant 0 : i32
    %c0_i32_1 = arith.constant 0 : i32
    %c0_i32_2 = arith.constant 0 : i32
    return %c0_i32, %c0_i32_0, %c0_i32_1 : i32, i32, i32
  }
  func.func @transform_5(%arg0: i32) -> (i32, i32) {
    %c0_i32 = arith.constant 0 : i32
    %c0_i32_0 = arith.constant 0 : i32
    %c0_i32_1 = arith.constant 0 : i32
    return %c0_i32, %c0_i32_0 : i32, i32
  }
  func.func @transform_6(%arg0: i32) -> (i32, i32) {
    %c0_i32 = arith.constant 0 : i32
    %c0_i32_0 = arith.constant 0 : i32
    %c0_i32_1 = arith.constant 0 : i32
    return %c0_i32, %c0_i32_0 : i32, i32
  }
  func.func @transform_7(%arg0: i32) -> (i32, i32, i32) {
    %c0_i32 = arith.constant 0 : i32
    %c0_i32_0 = arith.constant 0 : i32
    %c0_i32_1 = arith.constant 0 : i32
    return %arg0, %c0_i32, %c0_i32_0 : i32, i32, i32
  }
}

</mosaic_0001>

<llo_original>
// kernel: tpu_custom_call.1
$region0: #{tpu_custom_call.1}
  #allocation0 [shape = 'u32[]', space=smem, size = 0x4, offset = 0x4, fixed_abs, tag = 'smem constant byte address 0x4 - core index']
  #allocation1 [shape = 'u32[144,128]{1,0:T(1,128)}', space=vmem, size = 0x12000, scoped, tag = 'internal scratch']
  #allocation2 [shape = 'f32[72,128]{1,0:T(8,128)}', space=vmem, size = 0x9000, scoped, tag = 'scratch operand']
  %s0 = inlined_call_operand.hbm [shape: f32[2,72,128], index: 0, kind: input, shape index: {}]
  %s1 = inlined_call_operand.hbm [shape: f32[3,128,128], index: 1, kind: input, shape index: {}]
  %s2 = inlined_call_operand.vmem [shape: f32[1,128], index: 2, kind: input, shape index: {}]
  %s3 = inlined_call_operand.vmem [shape: f32[1,128], index: 3, kind: input, shape index: {}]
  %s4 = inlined_call_operand.hbm [shape: f32[3,128,128], index: 4, kind: input, shape index: {}]
  %s5 = inlined_call_operand.vmem [shape: f32[1,128], index: 5, kind: input, shape index: {}]
  %s6 = inlined_call_operand.vmem [shape: f32[1,128], index: 6, kind: input, shape index: {}]
  %s7 = inlined_call_operand.hbm [shape: f32[2,72,128], index: 7, kind: output, shape index: {}]
  %s8 = sld [smem:[#allocation0]]
  $region73: #{tpu_custom_call.1} parent=0
    _
  %s10 = ssub.s32 1, %s8
  %s11 = scalar_select 0, %s10, %s8
  $region1: #{tpu_custom_call.1} parent=0
    #allocation3 [shape = 'u8[73728]{0}', space=vmem, size = 0x12000, scoped, tag = 'input window, operand 0']
    #allocation4 [shape = 's32[2]{0}', space=sflag, size = 0x8, scoped, tag = 'scoped memory for tpu_custom_call.1']
    #allocation5 [shape = 's32[2]{0}', space=sflag, size = 0x8, scoped, tag = 'scoped memory for tpu_custom_call.1']
    #allocation6 [shape = 'u8[196608]{0}', space=vmem, size = 0x30000, scoped, tag = 'input window, operand 1, single buffered']
    #allocation7 [shape = 's32[1]{0}', space=sflag, size = 0x4, scoped, tag = 'scoped memory for tpu_custom_call.1']
    #allocation8 [shape = 'u8[196608]{0}', space=vmem, size = 0x30000, scoped, tag = 'input window, operand 4, single buffered']
    #allocation9 [shape = 'u8[73728]{0}', space=vmem, size = 0x12000, scoped, tag = 'output window, operand 0']
    %12 = vsyncpa [#allocation4], 0
    %s13 = scalar_lea.sflag [#allocation4], 1
    %14 = vsyncpa %s13, 0
    %15 = vsyncpa [#allocation7], 0
    %16 = vsyncpa [#allocation5], 0
    %s17 = scalar_lea.sflag [#allocation5], 1
    %18 = vsyncpa %s17, 0
    loop: start=0, step=1, limit=4
    $region2: #{tpu_custom_call.1} parent=1 // loop_pre_header
      _
    $region3: #{tpu_custom_call.1} parent=1 // loop_header
      %s20 = sphi 0, %s24
      %p21 = scmp.ge.s32.totalorder %s20, 4
      %s30 = sphi 0, %s32
      %s33 = sphi 0, %s30
      %s34 = sphi 0, %s33
      %s50 = sphi 0, %s34
      %s54 = sphi 0, %s54
      %s56 = sphi 0, %s54
      %s57 = sphi 0, %s56
      %s71 = sphi 0, %s57
      %s75 = sphi 0, %s75
      %s77 = sphi 0, %s75
      %s78 = sphi 0, %s77
      %s92 = sphi 0, %s78
      %s96 = sphi 0, %s96
      %s98 = sphi 0, %s96
      %s99 = sphi 0, %s98
      %s113 = sphi 0, %s99
      %s117 = sphi 0, %s117
      %s119 = sphi 0, %s117
      %s120 = sphi 0, %s119
      %s134 = sphi 0, %s120
      %s138 = sphi 0, %s138
      %s140 = sphi 0, %s138
      %s141 = sphi 0, %s140
      %s155 = sphi 0, %s141
      %s159 = sphi 0, %s159
      %s161 = sphi 0, %s159
      %s162 = sphi 0, %s161
      %s176 = sphi 0, %s162
      %s182 = sphi 0, %s184
      %s185 = sphi 0, %s182
      %s186 = sphi 0, %s185
      %s202 = sphi 0, %s186
    $region4: #{tpu_custom_call.1} parent=1 // loop_header_branch
      %23 = sbr.rel (%p21) target = $region8
    $region5: #{tpu_custom_call.1} parent=1 // loop_body
      %s25 = ssub.s32 %s20, 1
      %s26 = ssub.s32 %s20, 2
      %s27 = sadd.s32 %s20, 1
      %s28 = ssub.s32 %s20, %s27
      %p29 = scmp.eq.s32.totalorder %s28, 0
      %s31 = sadd.s32 %s30, 1
      %s32 = scalar_select %p29, %s30, %s31
      %p35 = pneg %p29
      %p36 = scmp.eq.s32.totalorder %s20, 1
      %p37 = por %p35, %p36
      %p38 = scmp.ne.s32.totalorder %s30, %s33
      %p39 = scmp.eq.s32.totalorder %s20, 0
      %p40 = por %p38, %p39
      %p41 = scmp.ne.s32.totalorder %s30, %s33
      %p42 = scmp.eq.s32.totalorder %s25, 1
      %p43 = por %p41, %p42
      %p44 = scmp.ne.s32.totalorder %s33, %s34
      %p45 = scmp.eq.s32.totalorder %s25, 0
      %p46 = por %p44, %p45
      %p47 = scmp.ne.s32.totalorder %s33, %s34
      %p48 = scmp.eq.s32.totalorder %s26, 1
      %p49 = por %p47, %p48
      %p51 = scmp.ne.s32.totalorder %s34, %s50
      %p52 = scmp.eq.s32.totalorder %s26, 0
      %p53 = por %p51, %p52
      %s55 = sadd.s32 %s54, 1
      %p58 = scmp.eq.s32.totalorder %s20, 1
      %p59 = scmp.ne.s32.totalorder %s54, %s56
      %p60 = scmp.eq.s32.totalorder %s20, 0
      %p61 = por %p59, %p60
      %p62 = scmp.ne.s32.totalorder %s54, %s56
      %p63 = scmp.eq.s32.totalorder %s25, 1
      %p64 = por %p62, %p63
      %p65 = scmp.ne.s32.totalorder %s56, %s57
      %p66 = scmp.eq.s32.totalorder %s25, 0
      %p67 = por %p65, %p66
      %p68 = scmp.ne.s32.totalorder %s56, %s57
      %p69 = scmp.eq.s32.totalorder %s26, 1
      %p70 = por %p68, %p69
      %p72 = scmp.ne.s32.totalorder %s57, %s71
      %p73 = scmp.eq.s32.totalorder %s26, 0
      %p74 = por %p72, %p73
      %s76 = sadd.s32 %s75, 1
      %p79 = scmp.eq.s32.totalorder %s20, 1
      %p80 = scmp.ne.s32.totalorder %s75, %s77
      %p81 = scmp.eq.s32.totalorder %s20, 0
      %p82 = por %p80, %p81
      %p83 = scmp.ne.s32.totalorder %s75, %s77
      %p84 = scmp.eq.s32.totalorder %s25, 1
      %p85 = por %p83, %p84
      %p86 = scmp.ne.s32.totalorder %s77, %s78
      %p87 = scmp.eq.s32.totalorder %s25, 0
      %p88 = por %p86, %p87
      %p89 = scmp.ne.s32.totalorder %s77, %s78
      %p90 = scmp.eq.s32.totalorder %s26, 1
      %p91 = por %p89, %p90
      %p93 = scmp.ne.s32.totalorder %s78, %s92
      %p94 = scmp.eq.s32.totalorder %s26, 0
      %p95 = por %p93, %p94
      %s97 = sadd.s32 %s96, 1
      %p100 = scmp.eq.s32.totalorder %s20, 1
      %p101 = scmp.ne.s32.totalorder %s96, %s98
      %p102 = scmp.eq.s32.totalorder %s20, 0
      %p103 = por %p101, %p102
      %p104 = scmp.ne.s32.totalorder %s96, %s98
      %p105 = scmp.eq.s32.totalorder %s25, 1
      %p106 = por %p104, %p105
      %p107 = scmp.ne.s32.totalorder %s98, %s99
      %p108 = scmp.eq.s32.totalorder %s25, 0
      %p109 = por %p107, %p108
      %p110 = scmp.ne.s32.totalorder %s98, %s99
      %p111 = scmp.eq.s32.totalorder %s26, 1
      %p112 = por %p110, %p111
      %p114 = scmp.ne.s32.totalorder %s99, %s113
      %p115 = scmp.eq.s32.totalorder %s26, 0
      %p116 = por %p114, %p115
      %s118 = sadd.s32 %s117, 1
      %p121 = scmp.eq.s32.totalorder %s20, 1
      %p122 = scmp.ne.s32.totalorder %s117, %s119
      %p123 = scmp.eq.s32.totalorder %s20, 0
      %p124 = por %p122, %p123
      %p125 = scmp.ne.s32.totalorder %s117, %s119
      %p126 = scmp.eq.s32.totalorder %s25, 1
      %p127 = por %p125, %p126
      %p128 = scmp.ne.s32.totalorder %s119, %s120
      %p129 = scmp.eq.s32.totalorder %s25, 0
      %p130 = por %p128, %p129
      %p131 = scmp.ne.s32.totalorder %s119, %s120
      %p132 = scmp.eq.s32.totalorder %s26, 1
      %p133 = por %p131, %p132
      %p135 = scmp.ne.s32.totalorder %s120, %s134
      %p136 = scmp.eq.s32.totalorder %s26, 0
      %p137 = por %p135, %p136
      %s139 = sadd.s32 %s138, 1
      %p142 = scmp.eq.s32.totalorder %s20, 1
      %p143 = scmp.ne.s32.totalorder %s138, %s140
      %p144 = scmp.eq.s32.totalorder %s20, 0
      %p145 = por %p143, %p144
      %p146 = scmp.ne.s32.totalorder %s138, %s140
      %p147 = scmp.eq.s32.totalorder %s25, 1
      %p148 = por %p146, %p147
      %p149 = scmp.ne.s32.totalorder %s140, %s141
      %p150 = scmp.eq.s32.totalorder %s25, 0
      %p151 = por %p149, %p150
      %p152 = scmp.ne.s32.totalorder %s140, %s141
      %p153 = scmp.eq.s32.totalorder %s26, 1
      %p154 = por %p152, %p153
      %p156 = scmp.ne.s32.totalorder %s141, %s155
      %p157 = scmp.eq.s32.totalorder %s26, 0
      %p158 = por %p156, %p157
      %s160 = sadd.s32 %s159, 1
      %p163 = scmp.eq.s32.totalorder %s20, 1
      %p164 = scmp.ne.s32.totalorder %s159, %s161
      %p165 = scmp.eq.s32.totalorder %s20, 0
      %p166 = por %p164, %p165
      %p167 = scmp.ne.s32.totalorder %s159, %s161
      %p168 = scmp.eq.s32.totalorder %s25, 1
      %p169 = por %p167, %p168
      %p170 = scmp.ne.s32.totalorder %s161, %s162
      %p171 = scmp.eq.s32.totalorder %s25, 0
      %p172 = por %p170, %p171
      %p173 = scmp.ne.s32.totalorder %s161, %s162
      %p174 = scmp.eq.s32.totalorder %s26, 1
      %p175 = por %p173, %p174
      %p177 = scmp.ne.s32.totalorder %s162, %s176
      %p178 = scmp.eq.s32.totalorder %s26, 0
      %p179 = por %p177, %p178
      %s180 = ssub.s32 %s20, %s27
      %p181 = scmp.eq.s32.totalorder %s180, 0
      %s183 = sadd.s32 %s182, 1
      %s184 = scalar_select %p181, %s182, %s183
      %p187 = pneg %p181
      %p188 = scmp.eq.s32.totalorder %s20, 1
      %p189 = por %p187, %p188
      %p190 = scmp.ne.s32.totalorder %s182, %s185
      %p191 = scmp.eq.s32.totalorder %s20, 0
      %p192 = por %p190, %p191
      %p193 = scmp.ne.s32.totalorder %s182, %s185
      %p194 = scmp.eq.s32.totalorder %s25, 1
      %p195 = por %p193, %p194
      %p196 = scmp.ne.s32.totalorder %s185, %s186
      %p197 = scmp.eq.s32.totalorder %s25, 0
      %p198 = por %p196, %p197
      %p199 = scmp.ne.s32.totalorder %s185, %s186
      %p200 = scmp.eq.s32.totalorder %s26, 1
      %p201 = por %p199, %p200
      %p203 = scmp.ne.s32.totalorder %s186, %s202
      %p204 = scmp.eq.s32.totalorder %s26, 0
      %p205 = por %p203, %p204
      %p206 = scmp.le.s32.totalorder 1, %s20
      %p207 = scmp.lt.s32.totalorder %s20, 3
      %p208 = pnand %p206, %p207
      %p209 = pneg %p208
      // Predicated region
      $region9: #{tpu_custom_call.1} parent=5 // pred_check
        _
      $region10: #{tpu_custom_call.1} parent=5 // pred_check_branch
        %211 = sbr.rel (%p208) target = $region12
      $region11: #{tpu_custom_call.1} parent=5 // pred_region
        %s212 = ssub.s32 %s20, 1
        // Predicated region
        $region13: #{tpu_custom_call.1} parent=11 // pred_check
          %p213 = pneg %p67
        $region14: #{tpu_custom_call.1} parent=11 // pred_check_branch
          %215 = sbr.rel (%p213) target = $region16
        $region15: #{tpu_custom_call.1} parent=11 // pred_region
          %s217 = ssub.s32 6144, 6144
          %218 = vsyncadd [#allocation7], %s217
          %s219 = sshll.u32 [#allocation6], 4
          %s220 = int_to_ptr.vmem [resolvable:$true] %s219
          %225 = dma.hbm_to_vmem [thread:$0]  %s1, 6144, %s220, [#allocation7], 128, 128, 8
        $region16: #{tpu_custom_call.1} parent=11 // pred_fallthru
          _
        // Predicated region
        $region17: #{tpu_custom_call.1} parent=11 // pred_check
          %p226 = pneg %p88
        $region18: #{tpu_custom_call.1} parent=11 // pred_check_branch
          %228 = sbr.rel (%p226) target = $region20
        $region19: #{tpu_custom_call.1} parent=11 // pred_region
          _
        $region20: #{tpu_custom_call.1} parent=11 // pred_fallthru
          _
        // Predicated region
        $region21: #{tpu_custom_call.1} parent=11 // pred_check
          %p229 = pneg %p109
        $region22: #{tpu_custom_call.1} parent=11 // pred_check_branch
          %231 = sbr.rel (%p229) target = $region24
        $region23: #{tpu_custom_call.1} parent=11 // pred_region
          _
        $region24: #{tpu_custom_call.1} parent=11 // pred_fallthru
          _
        // Predicated region
        $region25: #{tpu_custom_call.1} parent=11 // pred_check
          %p232 = pneg %p130
        $region26: #{tpu_custom_call.1} parent=11 // pred_check_branch
          %234 = sbr.rel (%p232) target = $region28
        $region27: #{tpu_custom_call.1} parent=11 // pred_region
          %s236 = ssub.s32 6144, 6144
          %237 = vsyncadd [#allocation7], %s236
          %s238 = sshll.u32 [#allocation8], 4
          %s239 = int_to_ptr.vmem [resolvable:$true] %s238
          %244 = dma.hbm_to_vmem [thread:$0]  %s4, 6144, %s239, [#allocation7], 128, 128, 8
        $region28: #{tpu_custom_call.1} parent=11 // pred_fallthru
          _
        // Predicated region
        $region29: #{tpu_custom_call.1} parent=11 // pred_check
          %p245 = pneg %p151
        $region30: #{tpu_custom_call.1} parent=11 // pred_check_branch
          %247 = sbr.rel (%p245) target = $region32
        $region31: #{tpu_custom_call.1} parent=11 // pred_region
          _
        $region32: #{tpu_custom_call.1} parent=11 // pred_fallthru
          _
        // Predicated region
        $region33: #{tpu_custom_call.1} parent=11 // pred_check
          %p248 = pneg %p172
        $region34: #{tpu_custom_call.1} parent=11 // pred_check_branch
          %250 = sbr.rel (%p248) target = $region36
        $region35: #{tpu_custom_call.1} parent=11 // pred_region
          _
        $region36: #{tpu_custom_call.1} parent=11 // pred_fallthru
          _
      $region12: #{tpu_custom_call.1} parent=5 // pred_fallthru
        _
      %p251 = scmp.lt.s32.totalorder %s20, 2
      // Predicated region
      $region37: #{tpu_custom_call.1} parent=5 // pred_check
        %p252 = pneg %p251
      $region38: #{tpu_custom_call.1} parent=5 // pred_check_branch
        %254 = sbr.rel (%p252) target = $region40
      $region39: #{tpu_custom_call.1} parent=5 // pred_region
        // Predicated region
        $region41: #{tpu_custom_call.1} parent=39 // pred_check
          %p255 = pneg %p40
        $region42: #{tpu_custom_call.1} parent=39 // pred_check_branch
          %257 = sbr.rel (%p255) target = $region44
        $region43: #{tpu_custom_call.1} parent=39 // pred_region
          %s258 = sand.u32 %s30, 1
          %s259 = scalar_lea.sflag [#allocation4], %s258
          %s260 = sand.u32 %s30, 1
          %s261 = smul.addr %s260, 72
          %s262 = scalar_lea.vmem [#allocation3], %s261
          %s264 = ssub.s32 1152, 1152
          %265 = vsyncadd %s259, %s264
          %s266 = smul.addr %s20, 9
          %s267 = smul.addr %s266, 128
          %s268 = scalar_lea.hbm %s0, %s267
          %s269 = sshll.u32 %s262, 4
          %s270 = int_to_ptr.vmem [resolvable:$true] %s269
          %275 = dma.hbm_to_vmem [thread:$0]  %s268, 1152, %s270, %s259, 128, 128, 8
        $region44: #{tpu_custom_call.1} parent=39 // pred_fallthru
          _
      $region40: #{tpu_custom_call.1} parent=5 // pred_fallthru
        _
      %p276 = scmp.le.s32.totalorder 1, %s20
      %p277 = scmp.lt.s32.totalorder %s20, 3
      %p278 = pnand %p276, %p277
      %p279 = pneg %p278
      // Predicated region
      $region45: #{tpu_custom_call.1} parent=5 // pred_check
        _
      $region46: #{tpu_custom_call.1} parent=5 // pred_check_branch
        %281 = sbr.rel (%p278) target = $region48
      $region47: #{tpu_custom_call.1} parent=5 // pred_region
        %s282 = ssub.s32 %s20, 1
        %s283 = sand.u32 %s33, 1
        %s284 = scalar_lea.sflag [#allocation4], %s283
        %s285 = sand.u32 %s33, 1
        %s286 = smul.addr %s285, 72
        %s287 = scalar_lea.vmem [#allocation3], %s286
        // Predicated region
        $region49: #{tpu_custom_call.1} parent=47 // pred_check
          %p288 = pneg %p46
        $region50: #{tpu_custom_call.1} parent=47 // pred_check_branch
          %290 = sbr.rel (%p288) target = $region52
        $region51: #{tpu_custom_call.1} parent=47 // pred_region
          %291 = dma.done %s284, 1152
        $region52: #{tpu_custom_call.1} parent=47 // pred_fallthru
          _
        // Predicated region
        $region53: #{tpu_custom_call.1} parent=47 // pred_check
          %p292 = pneg %p67
        $region54: #{tpu_custom_call.1} parent=47 // pred_check_branch
          %294 = sbr.rel (%p292) target = $region56
        $region55: #{tpu_custom_call.1} parent=47 // pred_region
          %295 = dma.done [#allocation7], 6144
        $region56: #{tpu_custom_call.1} parent=47 // pred_fallthru
          _
        // Predicated region
        $region57: #{tpu_custom_call.1} parent=47 // pred_check
          %p296 = pneg %p130
        $region58: #{tpu_custom_call.1} parent=47 // pred_check_branch
          %298 = sbr.rel (%p296) target = $region60
        $region59: #{tpu_custom_call.1} parent=47 // pred_region
          %299 = dma.done [#allocation7], 6144
        $region60: #{tpu_custom_call.1} parent=47 // pred_fallthru
          _
        %s300 = sand.u32 %s33, 1
        %s301 = scalar_lea.sflag [#allocation4], %s300
        %s302 = sand.u32 %s33, 1
        %s303 = smul.addr %s302, 72
        %s304 = scalar_lea.vmem [#allocation3], %s303
        %p305 = pneg %p46
        %p306 = pneg %p43
        %p307 = pneg %p67
        %p308 = pneg %p64
        %p309 = pneg %p88
        %p310 = pneg %p85
        %p311 = pneg %p109
        %p312 = pneg %p106
        %p313 = pneg %p130
        %p314 = pneg %p127
        %p315 = pneg %p151
        %p316 = pneg %p148
        %p317 = pneg %p172
        %p318 = pneg %p169
        %p319 = pneg %p198
        %p320 = pneg %p195
        %s321 = sand.u32 %s185, 1
        %s322 = scalar_lea.sflag [#allocation5], %s321
        %s323 = sand.u32 %s185, 1
        %s324 = smul.addr %s323, 72
        %s325 = scalar_lea.vmem [#allocation9], %s324
        %v326 = vld [vmem:[%s287] sm:$0xff]
        %v327 = vld [vmem:[%s287 + $0x8] sm:$0xff]
        %v328 = vld [vmem:[%s287 + $0x10] sm:$0xff]
        %v329 = vld [vmem:[%s287 + $0x18] sm:$0xff]
        %v330 = vld [vmem:[%s287 + $0x20] sm:$0xff]
        %v331 = vld [vmem:[%s287 + $0x28] sm:$0xff]
        %v332 = vld [vmem:[%s287 + $0x30] sm:$0xff]
        %v333 = vld [vmem:[%s287 + $0x38] sm:$0xff]
        %v334 = vld [vmem:[%s287 + $0x40] sm:$0xff]
        %v335 = vld [vmem:[#allocation6] sm:$0xff]
        %v336 = vld [vmem:[#allocation6 + $0x8] sm:$0xff]
        %v337 = vld [vmem:[#allocation6 + $0x10] sm:$0xff]
        %v338 = vld [vmem:[#allocation6 + $0x18] sm:$0xff]
        %v339 = vld [vmem:[#allocation6 + $0x20] sm:$0xff]
        %v340 = vld [vmem:[#allocation6 + $0x28] sm:$0xff]
        %v341 = vld [vmem:[#allocation6 + $0x30] sm:$0xff]
        %v342 = vld [vmem:[#allocation6 + $0x38] sm:$0xff]
        %v343 = vld [vmem:[#allocation6 + $0x40] sm:$0xff]
        %v344 = vld [vmem:[#allocation6 + $0x48] sm:$0xff]
        %v345 = vld [vmem:[#allocation6 + $0x50] sm:$0xff]
        %v346 = vld [vmem:[#allocation6 + $0x58] sm:$0xff]
        %v347 = vld [vmem:[#allocation6 + $0x60] sm:$0xff]
        %v348 = vld [vmem:[#allocation6 + $0x68] sm:$0xff]
        %v349 = vld [vmem:[#allocation6 + $0x70] sm:$0xff]
        %v350 = vld [vmem:[#allocation6 + $0x78] sm:$0xff]
        %s351 = scalar_lea.vmem [#allocation6], 128
        %v352 = vld [vmem:[%s351] sm:$0xff]
        %v353 = vld [vmem:[%s351 + $0x8] sm:$0xff]
        %v354 = vld [vmem:[%s351 + $0x10] sm:$0xff]
        %v355 = vld [vmem:[%s351 + $0x18] sm:$0xff]
        %v356 = vld [vmem:[%s351 + $0x20] sm:$0xff]
        %v357 = vld [vmem:[%s351 + $0x28] sm:$0xff]
        %v358 = vld [vmem:[%s351 + $0x30] sm:$0xff]
        %v359 = vld [vmem:[%s351 + $0x38] sm:$0xff]
        %v360 = vld [vmem:[%s351 + $0x40] sm:$0xff]
        %v361 = vld [vmem:[%s351 + $0x48] sm:$0xff]
        %v362 = vld [vmem:[%s351 + $0x50] sm:$0xff]
        %v363 = vld [vmem:[%s351 + $0x58] sm:$0xff]
        %v364 = vld [vmem:[%s351 + $0x60] sm:$0xff]
        %v365 = vld [vmem:[%s351 + $0x68] sm:$0xff]
        %v366 = vld [vmem:[%s351 + $0x70] sm:$0xff]
        %v367 = vld [vmem:[%s351 + $0x78] sm:$0xff]
        %vm377 = vcmask 1046528
        %v378 = vrot.slane %v326, 1
        %v379 = vrot.slane %v327, 1
        %v380 = vsel %vm377, %v378, %v379
        %v381 = vrot.slane %v328, 1
        %v382 = vsel %vm377, %v379, %v381
        %v383 = vrot.slane %v329, 1
        %v384 = vsel %vm377, %v381, %v383
        %v385 = vrot.slane %v330, 1
        %v386 = vsel %vm377, %v383, %v385
        %v387 = vrot.slane %v331, 1
        %v388 = vsel %vm377, %v385, %v387
        %v389 = vrot.slane %v332, 1
        %v390 = vsel %vm377, %v387, %v389
        %v391 = vrot.slane %v333, 1
        %v392 = vsel %vm377, %v389, %v391
        %v393 = vrot.slane %v334, 1
        %v394 = vsel %vm377, %v391, %v393
        %404 = vmatprep.subr.mxu0 0.0
        %405 = vmatpush1.msra.mxu0 %v367
        %406 = vmatprep.subr.mxu0 0.0
        %407 = vmatpush1.msra.mxu0 %v366
        %408 = vmatprep.subr.mxu0 0.0
        %409 = vmatpush1.msra.mxu0 %v365
        %410 = vmatprep.subr.mxu0 0.0
        %411 = vmatpush1.msra.mxu0 %v364
        %412 = vmatprep.subr.mxu0 0.0
        %413 = vmatpush1.msra.mxu0 %v363
        %414 = vmatprep.subr.mxu0 0.0
        %415 = vmatpush1.msra.mxu0 %v362
        %416 = vmatprep.subr.mxu0 0.0
        %417 = vmatpush1.msra.mxu0 %v361
        %418 = vmatprep.subr.mxu0 0.0
        %419 = vmatpush1.msra.mxu0 %v360
        %420 = vmatprep.subr.mxu0 0.0
        %421 = vmatpush1.msra.mxu0 %v359
        %422 = vmatprep.subr.mxu0 0.0
        %423 = vmatpush1.msra.mxu0 %v358
        %424 = vmatprep.subr.mxu0 0.0
        %425 = vmatpush1.msra.mxu0 %v357
        %426 = vmatprep.subr.mxu0 0.0
        %427 = vmatpush1.msra.mxu0 %v356
        %428 = vmatprep.subr.mxu0 0.0
        %429 = vmatpush1.msra.mxu0 %v355
        %430 = vmatprep.subr.mxu0 0.0
        %431 = vmatpush1.msra.mxu0 %v354
        %432 = vmatprep.subr.mxu0 0.0
        %433 = vmatpush1.msra.mxu0 %v353
        %434 = vmatprep.subr.mxu0 0.0
        %435 = vmatpush1.msra.mxu0 %v352
        %436 = vmatprep.subr.mxu0 0.0
        %437 = vmatpush2.msra.mxu0 0.0
        %438 = vmatprep.subr.mxu0 0.0
        %439 = vmatpush2.msra.mxu0 0.0
        %440 = vmatprep.subr.mxu0 0.0
        %441 = vmatpush2.msra.mxu0 0.0
        %442 = vmatprep.subr.mxu0 0.0
        %443 = vmatpush2.msra.mxu0 0.0
        %444 = vmatprep.subr.mxu0 0.0
        %445 = vmatpush2.msra.mxu0 0.0
        %446 = vmatprep.subr.mxu0 0.0
        %447 = vmatpush2.msra.mxu0 0.0
        %448 = vmatprep.subr.mxu0 0.0
        %449 = vmatpush2.msra.mxu0 0.0
        %450 = vmatprep.subr.mxu0 0.0
        %451 = vmatpush2.msra.mxu0 0.0
        %452 = vmatprep.subr.mxu0 0.0
        %453 = vmatpush2.msra.mxu0 0.0
        %454 = vmatprep.subr.mxu0 0.0
        %455 = vmatpush2.msra.mxu0 0.0
        %456 = vmatprep.subr.mxu0 0.0
        %457 = vmatpush2.msra.mxu0 0.0
        %458 = vmatprep.subr.mxu0 0.0
        %459 = vmatpush2.msra.mxu0 0.0
        %460 = vmatprep.subr.mxu0 0.0
        %461 = vmatpush2.msra.mxu0 0.0
        %462 = vmatprep.subr.mxu0 0.0
        %463 = vmatpush2.msra.mxu0 0.0
        %464 = vmatprep.subr.mxu0 0.0
        %465 = vmatpush2.msra.mxu0 0.0
        %466 = vmatprep.subr.mxu0 0.0
        %467 = vmatpush2.msra.mxu0 0.0
        %468 = vmatprep.mubr.f32.mxu0 0.0
        %469 = vmatmul.mubr.f32.gmra.mxu0 %v380
        %v470 = vpop.f32.mrf.mxu0
        %v471 = vadd.f32 0.0, %v470
        %v472 = vpop.f32.mrf.mxu0
        %473 = vmatprep.mubr.f32.mxu0 0.0
        %474 = vmatmul.mubr.f32.gmra.mxu0 %v382
        %v475 = vpop.f32.mrf.mxu0
        %v476 = vadd.f32 0.0, %v475
        %v477 = vpop.f32.mrf.mxu0
        %478 = vmatprep.mubr.f32.mxu0 0.0
        %479 = vmatmul.mubr.f32.gmra.mxu0 %v384
        %v480 = vpop.f32.mrf.mxu0
        %v481 = vadd.f32 0.0, %v480
        %v482 = vpop.f32.mrf.mxu0
        %483 = vmatprep.mubr.f32.mxu0 0.0
        %484 = vmatmul.mubr.f32.gmra.mxu0 %v386
        %v485 = vpop.f32.mrf.mxu0
        %v486 = vadd.f32 0.0, %v485
        %v487 = vpop.f32.mrf.mxu0
        %488 = vmatprep.mubr.f32.mxu0 0.0
        %489 = vmatmul.mubr.f32.gmra.mxu0 %v388
        %v490 = vpop.f32.mrf.mxu0
        %v491 = vadd.f32 0.0, %v490
        %v492 = vpop.f32.mrf.mxu0
        %493 = vmatprep.mubr.f32.mxu0 0.0
        %494 = vmatmul.mubr.f32.gmra.mxu0 %v390
        %v495 = vpop.f32.mrf.mxu0
        %v496 = vadd.f32 0.0, %v495
        %v497 = vpop.f32.mrf.mxu0
        %498 = vmatprep.mubr.f32.mxu0 0.0
        %499 = vmatmul.mubr.f32.gmra.mxu0 %v392
        %v500 = vpop.f32.mrf.mxu0
        %v501 = vadd.f32 0.0, %v500
        %v502 = vpop.f32.mrf.mxu0
        %503 = vmatprep.mubr.f32.mxu0 0.0
        %504 = vmatmul.mubr.f32.gmra.mxu0 %v394
        %v505 = vpop.f32.mrf.mxu0
        %v506 = vadd.f32 0.0, %v505
        %v507 = vpop.f32.mrf.mxu0
        %508 = vmatprep.mubr.f32.mxu0 0.0
        %509 = vmatmul.mubr.f32.gmra.mxu0 %v393
        %v510 = vpop.f32.mrf.mxu0
        %v511 = vadd.f32 0.0, %v510
        %v512 = vpop.f32.mrf.mxu0
        %513 = vdwg.mxu0
        %514 = vmatprep.subr.mxu0 0.0
        %515 = vmatpush1.msra.mxu0 %v350
        %516 = vmatprep.subr.mxu0 0.0
        %517 = vmatpush1.msra.mxu0 %v349
        %518 = vmatprep.subr.mxu0 0.0
        %519 = vmatpush1.msra.mxu0 %v348
        %520 = vmatprep.subr.mxu0 0.0
        %521 = vmatpush1.msra.mxu0 %v347
        %522 = vmatprep.subr.mxu0 0.0
        %523 = vmatpush1.msra.mxu0 %v346
        %524 = vmatprep.subr.mxu0 0.0
        %525 = vmatpush1.msra.mxu0 %v345
        %526 = vmatprep.subr.mxu0 0.0
        %527 = vmatpush1.msra.mxu0 %v344
        %528 = vmatprep.subr.mxu0 0.0
        %529 = vmatpush1.msra.mxu0 %v343
        %530 = vmatprep.subr.mxu0 0.0
        %531 = vmatpush1.msra.mxu0 %v342
        %532 = vmatprep.subr.mxu0 0.0
        %533 = vmatpush1.msra.mxu0 %v341
        %534 = vmatprep.subr.mxu0 0.0
        %535 = vmatpush1.msra.mxu0 %v340
        %536 = vmatprep.subr.mxu0 0.0
        %537 = vmatpush1.msra.mxu0 %v339
        %538 = vmatprep.subr.mxu0 0.0
        %539 = vmatpush1.msra.mxu0 %v338
        %540 = vmatprep.subr.mxu0 0.0
        %541 = vmatpush1.msra.mxu0 %v337
        %542 = vmatprep.subr.mxu0 0.0
        %543 = vmatpush1.msra.mxu0 %v336
        %544 = vmatprep.subr.mxu0 0.0
        %545 = vmatpush1.msra.mxu0 %v335
        %546 = vmatprep.subr.mxu0 0.0
        %547 = vmatpush2.msra.mxu0 0.0
        %548 = vmatprep.subr.mxu0 0.0
        %549 = vmatpush2.msra.mxu0 0.0
        %550 = vmatprep.subr.mxu0 0.0
        %551 = vmatpush2.msra.mxu0 0.0
        %552 = vmatprep.subr.mxu0 0.0
        %553 = vmatpush2.msra.mxu0 0.0
        %554 = vmatprep.subr.mxu0 0.0
        %555 = vmatpush2.msra.mxu0 0.0
        %556 = vmatprep.subr.mxu0 0.0
        %557 = vmatpush2.msra.mxu0 0.0
        %558 = vmatprep.subr.mxu0 0.0
        %559 = vmatpush2.msra.mxu0 0.0
        %560 = vmatprep.subr.mxu0 0.0
        %561 = vmatpush2.msra.mxu0 0.0
        %562 = vmatprep.subr.mxu0 0.0
        %563 = vmatpush2.msra.mxu0 0.0
        %564 = vmatprep.subr.mxu0 0.0
        %565 = vmatpush2.msra.mxu0 0.0
        %566 = vmatprep.subr.mxu0 0.0
        %567 = vmatpush2.msra.mxu0 0.0
        %568 = vmatprep.subr.mxu0 0.0
        %569 = vmatpush2.msra.mxu0 0.0
        %570 = vmatprep.subr.mxu0 0.0
        %571 = vmatpush2.msra.mxu0 0.0
        %572 = vmatprep.subr.mxu0 0.0
        %573 = vmatpush2.msra.mxu0 0.0
        %574 = vmatprep.subr.mxu0 0.0
        %575 = vmatpush2.msra.mxu0 0.0
        %576 = vmatprep.subr.mxu0 0.0
        %577 = vmatpush2.msra.mxu0 0.0
        %578 = vmatprep.mubr.f32.mxu0 0.0
        %579 = vmatmul.mubr.f32.gmra.mxu0 %v326
        %v580 = vpop.f32.mrf.mxu0
        %v581 = vadd.f32 %v471, %v580
        %v582 = vpop.f32.mrf.mxu0
        %583 = vmatprep.mubr.f32.mxu0 0.0
        %584 = vmatmul.mubr.f32.gmra.mxu0 %v327
        %v585 = vpop.f32.mrf.mxu0
        %v586 = vadd.f32 %v476, %v585
        %v587 = vpop.f32.mrf.mxu0
        %588 = vmatprep.mubr.f32.mxu0 0.0
        %589 = vmatmul.mubr.f32.gmra.mxu0 %v328
        %v590 = vpop.f32.mrf.mxu0
        %v591 = vadd.f32 %v481, %v590
        %v592 = vpop.f32.mrf.mxu0
        %593 = vmatprep.mubr.f32.mxu0 0.0
        %594 = vmatmul.mubr.f32.gmra.mxu0 %v329
        %v595 = vpop.f32.mrf.mxu0
        %v596 = vadd.f32 %v486, %v595
        %v597 = vpop.f32.mrf.mxu0
        %598 = vmatprep.mubr.f32.mxu0 0.0
        %599 = vmatmul.mubr.f32.gmra.mxu0 %v330
        %v600 = vpop.f32.mrf.mxu0
        %v601 = vadd.f32 %v491, %v600
        %v602 = vpop.f32.mrf.mxu0
        %603 = vmatprep.mubr.f32.mxu0 0.0
        %604 = vmatmul.mubr.f32.gmra.mxu0 %v331
        %v605 = vpop.f32.mrf.mxu0
        %v606 = vadd.f32 %v496, %v605
        %v607 = vpop.f32.mrf.mxu0
        %608 = vmatprep.mubr.f32.mxu0 0.0
        %609 = vmatmul.mubr.f32.gmra.mxu0 %v332
        %v610 = vpop.f32.mrf.mxu0
        %v611 = vadd.f32 %v501, %v610
        %v612 = vpop.f32.mrf.mxu0
        %613 = vmatprep.mubr.f32.mxu0 0.0
        %614 = vmatmul.mubr.f32.gmra.mxu0 %v333
        %v615 = vpop.f32.mrf.mxu0
        %v616 = vadd.f32 %v506, %v615
        %v617 = vpop.f32.mrf.mxu0
        %618 = vmatprep.mubr.f32.mxu0 0.0
        %619 = vmatmul.mubr.f32.gmra.mxu0 %v334
        %v620 = vpop.f32.mrf.mxu0
        %v621 = vadd.f32 %v511, %v620
        %v622 = vpop.f32.mrf.mxu0
        %623 = vdwg.mxu0
        %s624 = scalar_lea.vmem [#allocation6], 256
        %v625 = vld [vmem:[%s624] sm:$0xff]
        %v626 = vld [vmem:[%s624 + $0x8] sm:$0xff]
        %v627 = vld [vmem:[%s624 + $0x10] sm:$0xff]
        %v628 = vld [vmem:[%s624 + $0x18] sm:$0xff]
        %v629 = vld [vmem:[%s624 + $0x20] sm:$0xff]
        %v630 = vld [vmem:[%s624 + $0x28] sm:$0xff]
        %v631 = vld [vmem:[%s624 + $0x30] sm:$0xff]
        %v632 = vld [vmem:[%s624 + $0x38] sm:$0xff]
        %v633 = vld [vmem:[%s624 + $0x40] sm:$0xff]
        %v634 = vld [vmem:[%s624 + $0x48] sm:$0xff]
        %v635 = vld [vmem:[%s624 + $0x50] sm:$0xff]
        %v636 = vld [vmem:[%s624 + $0x58] sm:$0xff]
        %v637 = vld [vmem:[%s624 + $0x60] sm:$0xff]
        %v638 = vld [vmem:[%s624 + $0x68] sm:$0xff]
        %v639 = vld [vmem:[%s624 + $0x70] sm:$0xff]
        %v640 = vld [vmem:[%s624 + $0x78] sm:$0xff]
        %vm641 = vcmask 1045504
        %v642 = vrot.slane %v326, 2
        %v643 = vrot.slane %v327, 2
        %v644 = vsel %vm641, %v642, %v643
        %v645 = vrot.slane %v328, 2
        %v646 = vsel %vm641, %v643, %v645
        %v647 = vrot.slane %v329, 2
        %v648 = vsel %vm641, %v645, %v647
        %v649 = vrot.slane %v330, 2
        %v650 = vsel %vm641, %v647, %v649
        %v651 = vrot.slane %v331, 2
        %v652 = vsel %vm641, %v649, %v651
        %v653 = vrot.slane %v332, 2
        %v654 = vsel %vm641, %v651, %v653
        %v655 = vrot.slane %v333, 2
        %v656 = vsel %vm641, %v653, %v655
        %v657 = vrot.slane %v334, 2
        %v658 = vsel %vm641, %v655, %v657
        %668 = vmatprep.subr.mxu0 0.0
        %669 = vmatpush1.msra.mxu0 %v640
        %670 = vmatprep.subr.mxu0 0.0
        %671 = vmatpush1.msra.mxu0 %v639
        %672 = vmatprep.subr.mxu0 0.0
        %673 = vmatpush1.msra.mxu0 %v638
        %674 = vmatprep.subr.mxu0 0.0
        %675 = vmatpush1.msra.mxu0 %v637
        %676 = vmatprep.subr.mxu0 0.0
        %677 = vmatpush1.msra.mxu0 %v636
        %678 = vmatprep.subr.mxu0 0.0
        %679 = vmatpush1.msra.mxu0 %v635
        %680 = vmatprep.subr.mxu0 0.0
        %681 = vmatpush1.msra.mxu0 %v634
        %682 = vmatprep.subr.mxu0 0.0
        %683 = vmatpush1.msra.mxu0 %v633
        %684 = vmatprep.subr.mxu0 0.0
        %685 = vmatpush1.msra.mxu0 %v632
        %686 = vmatprep.subr.mxu0 0.0
        %687 = vmatpush1.msra.mxu0 %v631
        %688 = vmatprep.subr.mxu0 0.0
        %689 = vmatpush1.msra.mxu0 %v630
        %690 = vmatprep.subr.mxu0 0.0
        %691 = vmatpush1.msra.mxu0 %v629
        %692 = vmatprep.subr.mxu0 0.0
        %693 = vmatpush1.msra.mxu0 %v628
        %694 = vmatprep.subr.mxu0 0.0
        %695 = vmatpush1.msra.mxu0 %v627
        %696 = vmatprep.subr.mxu0 0.0
        %697 = vmatpush1.msra.mxu0 %v626
        %698 = vmatprep.subr.mxu0 0.0
        %699 = vmatpush1.msra.mxu0 %v625
        %700 = vmatprep.subr.mxu0 0.0
        %701 = vmatpush2.msra.mxu0 0.0
        %702 = vmatprep.subr.mxu0 0.0
        %703 = vmatpush2.msra.mxu0 0.0
        %704 = vmatprep.subr.mxu0 0.0
        %705 = vmatpush2.msra.mxu0 0.0
        %706 = vmatprep.subr.mxu0 0.0
        %707 = vmatpush2.msra.mxu0 0.0
        %708 = vmatprep.subr.mxu0 0.0
        %709 = vmatpush2.msra.mxu0 0.0
        %710 = vmatprep.subr.mxu0 0.0
        %711 = vmatpush2.msra.mxu0 0.0
        %712 = vmatprep.subr.mxu0 0.0
        %713 = vmatpush2.msra.mxu0 0.0
        %714 = vmatprep.subr.mxu0 0.0
        %715 = vmatpush2.msra.mxu0 0.0
        %716 = vmatprep.subr.mxu0 0.0
        %717 = vmatpush2.msra.mxu0 0.0
        %718 = vmatprep.subr.mxu0 0.0
        %719 = vmatpush2.msra.mxu0 0.0
        %720 = vmatprep.subr.mxu0 0.0
        %721 = vmatpush2.msra.mxu0 0.0
        %722 = vmatprep.subr.mxu0 0.0
        %723 = vmatpush2.msra.mxu0 0.0
        %724 = vmatprep.subr.mxu0 0.0
        %725 = vmatpush2.msra.mxu0 0.0
        %726 = vmatprep.subr.mxu0 0.0
        %727 = vmatpush2.msra.mxu0 0.0
        %728 = vmatprep.subr.mxu0 0.0
        %729 = vmatpush2.msra.mxu0 0.0
        %730 = vmatprep.subr.mxu0 0.0
        %731 = vmatpush2.msra.mxu0 0.0
        %732 = vmatprep.mubr.f32.mxu0 0.0
        %733 = vmatmul.mubr.f32.gmra.mxu0 %v644
        %v734 = vpop.f32.mrf.mxu0
        %v735 = vadd.f32 0.0, %v734
        %v736 = vpop.f32.mrf.mxu0
        %737 = vmatprep.mubr.f32.mxu0 0.0
        %738 = vmatmul.mubr.f32.gmra.mxu0 %v646
        %v739 = vpop.f32.mrf.mxu0
        %v740 = vadd.f32 0.0, %v739
        %v741 = vpop.f32.mrf.mxu0
        %742 = vmatprep.mubr.f32.mxu0 0.0
        %743 = vmatmul.mubr.f32.gmra.mxu0 %v648
        %v744 = vpop.f32.mrf.mxu0
        %v745 = vadd.f32 0.0, %v744
        %v746 = vpop.f32.mrf.mxu0
        %747 = vmatprep.mubr.f32.mxu0 0.0
        %748 = vmatmul.mubr.f32.gmra.mxu0 %v650
        %v749 = vpop.f32.mrf.mxu0
        %v750 = vadd.f32 0.0, %v749
        %v751 = vpop.f32.mrf.mxu0
        %752 = vmatprep.mubr.f32.mxu0 0.0
        %753 = vmatmul.mubr.f32.gmra.mxu0 %v652
        %v754 = vpop.f32.mrf.mxu0
        %v755 = vadd.f32 0.0, %v754
        %v756 = vpop.f32.mrf.mxu0
        %757 = vmatprep.mubr.f32.mxu0 0.0
        %758 = vmatmul.mubr.f32.gmra.mxu0 %v654
        %v759 = vpop.f32.mrf.mxu0
        %v760 = vadd.f32 0.0, %v759
        %v761 = vpop.f32.mrf.mxu0
        %762 = vmatprep.mubr.f32.mxu0 0.0
        %763 = vmatmul.mubr.f32.gmra.mxu0 %v656
        %v764 = vpop.f32.mrf.mxu0
        %v765 = vadd.f32 0.0, %v764
        %v766 = vpop.f32.mrf.mxu0
        %767 = vmatprep.mubr.f32.mxu0 0.0
        %768 = vmatmul.mubr.f32.gmra.mxu0 %v658
        %v769 = vpop.f32.mrf.mxu0
        %v770 = vadd.f32 0.0, %v769
        %v771 = vpop.f32.mrf.mxu0
        %772 = vmatprep.mubr.f32.mxu0 0.0
        %773 = vmatmul.mubr.f32.gmra.mxu0 %v657
        %v774 = vpop.f32.mrf.mxu0
        %v775 = vadd.f32 0.0, %v774
        %v776 = vpop.f32.mrf.mxu0
        %777 = vdwg.mxu0
        %v778 = vadd.f32 %v581, %v735
        %v779 = vadd.f32 %v586, %v740
        %v780 = vadd.f32 %v591, %v745
        %v781 = vadd.f32 %v596, %v750
        %v782 = vadd.f32 %v601, %v755
        %v783 = vadd.f32 %v606, %v760
        %v784 = vadd.f32 %v611, %v765
        %v785 = vadd.f32 %v616, %v770
        %v786 = vadd.f32 %v621, %v775
        %v787 = vld [vmem:[%s2] sm:$0x1]
        %v789 = vlaneseq
        %v790 = vshrl.u32 %v789, 7
        %v791 = vsub.s32 0, %v790
        %v792 = vrot.slane %v787, %v791
        %v794 = vmul.f32 %v778, %v792
        %v795 = vmul.f32 %v779, %v792
        %v796 = vmul.f32 %v780, %v792
        %v797 = vmul.f32 %v781, %v792
        %v798 = vmul.f32 %v782, %v792
        %v799 = vmul.f32 %v783, %v792
        %v800 = vmul.f32 %v784, %v792
        %v801 = vmul.f32 %v785, %v792
        %v802 = vmul.f32 %v786, %v792
        %v803 = vld [vmem:[%s3] sm:$0x1]
        %v805 = vlaneseq
        %v806 = vshrl.u32 %v805, 7
        %v807 = vsub.s32 0, %v806
        %v808 = vrot.slane %v803, %v807
        %v810 = vadd.f32 %v794, %v808
        %v811 = vadd.f32 %v795, %v808
        %v812 = vadd.f32 %v796, %v808
        %v813 = vadd.f32 %v797, %v808
        %v814 = vadd.f32 %v798, %v808
        %v815 = vadd.f32 %v799, %v808
        %v816 = vadd.f32 %v800, %v808
        %v817 = vadd.f32 %v801, %v808
        %v818 = vadd.f32 %v802, %v808
        %v819 = vmax.f32 %v810, 0.0
        %v820 = vmax.f32 %v811, 0.0
        %v821 = vmax.f32 %v812, 0.0
        %v822 = vmax.f32 %v813, 0.0
        %v823 = vmax.f32 %v814, 0.0
        %v824 = vmax.f32 %v815, 0.0
        %v825 = vmax.f32 %v816, 0.0
        %v826 = vmax.f32 %v817, 0.0
        %v827 = vmax.f32 %v818, 0.0
        %828 = vst [vmem:[#allocation2 + $0x1] sm:$0xff] %v819
        %829 = vst [vmem:[#allocation2 + $0x9] sm:$0xff] %v820
        %830 = vst [vmem:[#allocation2 + $0x11] sm:$0xff] %v821
        %831 = vst [vmem:[#allocation2 + $0x19] sm:$0xff] %v822
        %832 = vst [vmem:[#allocation2 + $0x21] sm:$0xff] %v823
        %833 = vst [vmem:[#allocation2 + $0x29] sm:$0xff] %v824
        %834 = vst [vmem:[#allocation2 + $0x31] sm:$0xff] %v825
        %835 = vst [vmem:[#allocation2 + $0x39] sm:$0xff] %v826
        %836 = vst [vmem:[#allocation2 + $0x41] sm:$0x3f] %v827
        %837 = vst [vmem:[#allocation2] sm:$0x1] 0.0
        %838 = vst [vmem:[#allocation2 + $0x47] sm:$0x1] 0.0
        %839 = vst [vmem:[#allocation2 + $0x11] sm:$0x3] 0.0
        %840 = vst [vmem:[#allocation2 + $0x23] sm:$0x3] 0.0
        %841 = vst [vmem:[#allocation2 + $0x35] sm:$0x3] 0.0
        %v842 = vld [vmem:[#allocation2] sm:$0xff]
        %v843 = vld [vmem:[#allocation2 + $0x8] sm:$0xff]
        %v844 = vld [vmem:[#allocation2 + $0x10] sm:$0xff]
        %v845 = vld [vmem:[#allocation2 + $0x18] sm:$0xff]
        %v846 = vld [vmem:[#allocation2 + $0x20] sm:$0xff]
        %v847 = vld [vmem:[#allocation2 + $0x28] sm:$0xff]
        %v848 = vld [vmem:[#allocation2 + $0x30] sm:$0xff]
        %v849 = vld [vmem:[#allocation2 + $0x38] sm:$0xff]
        %v850 = vld [vmem:[#allocation2 + $0x40] sm:$0x3f]
        %v851 = vld [vmem:[#allocation8] sm:$0xff]
        %v852 = vld [vmem:[#allocation8 + $0x8] sm:$0xff]
        %v853 = vld [vmem:[#allocation8 + $0x10] sm:$0xff]
        %v854 = vld [vmem:[#allocation8 + $0x18] sm:$0xff]
        %v855 = vld [vmem:[#allocation8 + $0x20] sm:$0xff]
        %v856 = vld [vmem:[#allocation8 + $0x28] sm:$0xff]
        %v857 = vld [vmem:[#allocation8 + $0x30] sm:$0xff]
        %v858 = vld [vmem:[#allocation8 + $0x38] sm:$0xff]
        %v859 = vld [vmem:[#allocation8 + $0x40] sm:$0xff]
        %v860 = vld [vmem:[#allocation8 + $0x48] sm:$0xff]
        %v861 = vld [vmem:[#allocation8 + $0x50] sm:$0xff]
        %v862 = vld [vmem:[#allocation8 + $0x58] sm:$0xff]
        %v863 = vld [vmem:[#allocation8 + $0x60] sm:$0xff]
        %v864 = vld [vmem:[#allocation8 + $0x68] sm:$0xff]
        %v865 = vld [vmem:[#allocation8 + $0x70] sm:$0xff]
        %v866 = vld [vmem:[#allocation8 + $0x78] sm:$0xff]
        %v867 = vld [vmem:[#allocation2 + $0x1] sm:$0xff]
        %v868 = vld [vmem:[#allocation2 + $0x9] sm:$0xff]
        %v869 = vld [vmem:[#allocation2 + $0x11] sm:$0xff]
        %v870 = vld [vmem:[#allocation2 + $0x19] sm:$0xff]
        %v871 = vld [vmem:[#allocation2 + $0x21] sm:$0xff]
        %v872 = vld [vmem:[#allocation2 + $0x29] sm:$0xff]
        %v873 = vld [vmem:[#allocation2 + $0x31] sm:$0xff]
        %v874 = vld [vmem:[#allocation2 + $0x39] sm:$0xff]
        %v875 = vld [vmem:[#allocation2 + $0x41] sm:$0x3f]
        %s876 = scalar_lea.vmem [#allocation8], 128
        %v877 = vld [vmem:[%s876] sm:$0xff]
        %v878 = vld [vmem:[%s876 + $0x8] sm:$0xff]
        %v879 = vld [vmem:[%s876 + $0x10] sm:$0xff]
        %v880 = vld [vmem:[%s876 + $0x18] sm:$0xff]
        %v881 = vld [vmem:[%s876 + $0x20] sm:$0xff]
        %v882 = vld [vmem:[%s876 + $0x28] sm:$0xff]
        %v883 = vld [vmem:[%s876 + $0x30] sm:$0xff]
        %v884 = vld [vmem:[%s876 + $0x38] sm:$0xff]
        %v885 = vld [vmem:[%s876 + $0x40] sm:$0xff]
        %v886 = vld [vmem:[%s876 + $0x48] sm:$0xff]
        %v887 = vld [vmem:[%s876 + $0x50] sm:$0xff]
        %v888 = vld [vmem:[%s876 + $0x58] sm:$0xff]
        %v889 = vld [vmem:[%s876 + $0x60] sm:$0xff]
        %v890 = vld [vmem:[%s876 + $0x68] sm:$0xff]
        %v891 = vld [vmem:[%s876 + $0x70] sm:$0xff]
        %v892 = vld [vmem:[%s876 + $0x78] sm:$0xff]
        %893 = vmatprep.subr.mxu0 0.0
        %894 = vmatpush1.msra.mxu0 %v892
        %895 = vmatprep.subr.mxu0 0.0
        %896 = vmatpush1.msra.mxu0 %v891
        %897 = vmatprep.subr.mxu0 0.0
        %898 = vmatpush1.msra.mxu0 %v890
        %899 = vmatprep.subr.mxu0 0.0
        %900 = vmatpush1.msra.mxu0 %v889
        %901 = vmatprep.subr.mxu0 0.0
        %902 = vmatpush1.msra.mxu0 %v888
        %903 = vmatprep.subr.mxu0 0.0
        %904 = vmatpush1.msra.mxu0 %v887
        %905 = vmatprep.subr.mxu0 0.0
        %906 = vmatpush1.msra.mxu0 %v886
        %907 = vmatprep.subr.mxu0 0.0
        %908 = vmatpush1.msra.mxu0 %v885
        %909 = vmatprep.subr.mxu0 0.0
        %910 = vmatpush1.msra.mxu0 %v884
        %911 = vmatprep.subr.mxu0 0.0
        %912 = vmatpush1.msra.mxu0 %v883
        %913 = vmatprep.subr.mxu0 0.0
        %914 = vmatpush1.msra.mxu0 %v882
        %915 = vmatprep.subr.mxu0 0.0
        %916 = vmatpush1.msra.mxu0 %v881
        %917 = vmatprep.subr.mxu0 0.0
        %918 = vmatpush1.msra.mxu0 %v880
        %919 = vmatprep.subr.mxu0 0.0
        %920 = vmatpush1.msra.mxu0 %v879
        %921 = vmatprep.subr.mxu0 0.0
        %922 = vmatpush1.msra.mxu0 %v878
        %923 = vmatprep.subr.mxu0 0.0
        %924 = vmatpush1.msra.mxu0 %v877
        %925 = vmatprep.subr.mxu0 0.0
        %926 = vmatpush2.msra.mxu0 0.0
        %927 = vmatprep.subr.mxu0 0.0
        %928 = vmatpush2.msra.mxu0 0.0
        %929 = vmatprep.subr.mxu0 0.0
        %930 = vmatpush2.msra.mxu0 0.0
        %931 = vmatprep.subr.mxu0 0.0
        %932 = vmatpush2.msra.mxu0 0.0
        %933 = vmatprep.subr.mxu0 0.0
        %934 = vmatpush2.msra.mxu0 0.0
        %935 = vmatprep.subr.mxu0 0.0
        %936 = vmatpush2.msra.mxu0 0.0
        %937 = vmatprep.subr.mxu0 0.0
        %938 = vmatpush2.msra.mxu0 0.0
        %939 = vmatprep.subr.mxu0 0.0
        %940 = vmatpush2.msra.mxu0 0.0
        %941 = vmatprep.subr.mxu0 0.0
        %942 = vmatpush2.msra.mxu0 0.0
        %943 = vmatprep.subr.mxu0 0.0
        %944 = vmatpush2.msra.mxu0 0.0
        %945 = vmatprep.subr.mxu0 0.0
        %946 = vmatpush2.msra.mxu0 0.0
        %947 = vmatprep.subr.mxu0 0.0
        %948 = vmatpush2.msra.mxu0 0.0
        %949 = vmatprep.subr.mxu0 0.0
        %950 = vmatpush2.msra.mxu0 0.0
        %951 = vmatprep.subr.mxu0 0.0
        %952 = vmatpush2.msra.mxu0 0.0
        %953 = vmatprep.subr.mxu0 0.0
        %954 = vmatpush2.msra.mxu0 0.0
        %955 = vmatprep.subr.mxu0 0.0
        %956 = vmatpush2.msra.mxu0 0.0
        %957 = vmatprep.mubr.f32.mxu0 0.0
        %958 = vmatmul.mubr.f32.gmra.mxu0 %v867
        %v959 = vpop.f32.mrf.mxu0
        %v960 = vadd.f32 0.0, %v959
        %v961 = vpop.f32.mrf.mxu0
        %962 = vmatprep.mubr.f32.mxu0 0.0
        %963 = vmatmul.mubr.f32.gmra.mxu0 %v868
        %v964 = vpop.f32.mrf.mxu0
        %v965 = vadd.f32 0.0, %v964
        %v966 = vpop.f32.mrf.mxu0
        %967 = vmatprep.mubr.f32.mxu0 0.0
        %968 = vmatmul.mubr.f32.gmra.mxu0 %v869
        %v969 = vpop.f32.mrf.mxu0
        %v970 = vadd.f32 0.0, %v969
        %v971 = vpop.f32.mrf.mxu0
        %972 = vmatprep.mubr.f32.mxu0 0.0
        %973 = vmatmul.mubr.f32.gmra.mxu0 %v870
        %v974 = vpop.f32.mrf.mxu0
        %v975 = vadd.f32 0.0, %v974
        %v976 = vpop.f32.mrf.mxu0
        %977 = vmatprep.mubr.f32.mxu0 0.0
        %978 = vmatmul.mubr.f32.gmra.mxu0 %v871
        %v979 = vpop.f32.mrf.mxu0
        %v980 = vadd.f32 0.0, %v979
        %v981 = vpop.f32.mrf.mxu0
        %982 = vmatprep.mubr.f32.mxu0 0.0
        %983 = vmatmul.mubr.f32.gmra.mxu0 %v872
        %v984 = vpop.f32.mrf.mxu0
        %v985 = vadd.f32 0.0, %v984
        %v986 = vpop.f32.mrf.mxu0
        %987 = vmatprep.mubr.f32.mxu0 0.0
        %988 = vmatmul.mubr.f32.gmra.mxu0 %v873
        %v989 = vpop.f32.mrf.mxu0
        %v990 = vadd.f32 0.0, %v989
        %v991 = vpop.f32.mrf.mxu0
        %992 = vmatprep.mubr.f32.mxu0 0.0
        %993 = vmatmul.mubr.f32.gmra.mxu0 %v874
        %v994 = vpop.f32.mrf.mxu0
        %v995 = vadd.f32 0.0, %v994
        %v996 = vpop.f32.mrf.mxu0
        %997 = vmatprep.mubr.f32.mxu0 0.0
        %998 = vmatmul.mubr.f32.gmra.mxu0 %v875
        %v999 = vpop.f32.mrf.mxu0
        %v1000 = vadd.f32 0.0, %v999
        %v1001 = vpop.f32.mrf.mxu0
        %1002 = vdwg.mxu0
        %1003 = vmatprep.subr.mxu0 0.0
        %1004 = vmatpush1.msra.mxu0 %v866
        %1005 = vmatprep.subr.mxu0 0.0
        %1006 = vmatpush1.msra.mxu0 %v865
        %1007 = vmatprep.subr.mxu0 0.0
        %1008 = vmatpush1.msra.mxu0 %v864
        %1009 = vmatprep.subr.mxu0 0.0
        %1010 = vmatpush1.msra.mxu0 %v863
        %1011 = vmatprep.subr.mxu0 0.0
        %1012 = vmatpush1.msra.mxu0 %v862
        %1013 = vmatprep.subr.mxu0 0.0
        %1014 = vmatpush1.msra.mxu0 %v861
        %1015 = vmatprep.subr.mxu0 0.0
        %1016 = vmatpush1.msra.mxu0 %v860
        %1017 = vmatprep.subr.mxu0 0.0
        %1018 = vmatpush1.msra.mxu0 %v859
        %1019 = vmatprep.subr.mxu0 0.0
        %1020 = vmatpush1.msra.mxu0 %v858
        %1021 = vmatprep.subr.mxu0 0.0
        %1022 = vmatpush1.msra.mxu0 %v857
        %1023 = vmatprep.subr.mxu0 0.0
        %1024 = vmatpush1.msra.mxu0 %v856
        %1025 = vmatprep.subr.mxu0 0.0
        %1026 = vmatpush1.msra.mxu0 %v855
        %1027 = vmatprep.subr.mxu0 0.0
        %1028 = vmatpush1.msra.mxu0 %v854
        %1029 = vmatprep.subr.mxu0 0.0
        %1030 = vmatpush1.msra.mxu0 %v853
        %1031 = vmatprep.subr.mxu0 0.0
        %1032 = vmatpush1.msra.mxu0 %v852
        %1033 = vmatprep.subr.mxu0 0.0
        %1034 = vmatpush1.msra.mxu0 %v851
        %1035 = vmatprep.subr.mxu0 0.0
        %1036 = vmatpush2.msra.mxu0 0.0
        %1037 = vmatprep.subr.mxu0 0.0
        %1038 = vmatpush2.msra.mxu0 0.0
        %1039 = vmatprep.subr.mxu0 0.0
        %1040 = vmatpush2.msra.mxu0 0.0
        %1041 = vmatprep.subr.mxu0 0.0
        %1042 = vmatpush2.msra.mxu0 0.0
        %1043 = vmatprep.subr.mxu0 0.0
        %1044 = vmatpush2.msra.mxu0 0.0
        %1045 = vmatprep.subr.mxu0 0.0
        %1046 = vmatpush2.msra.mxu0 0.0
        %1047 = vmatprep.subr.mxu0 0.0
        %1048 = vmatpush2.msra.mxu0 0.0
        %1049 = vmatprep.subr.mxu0 0.0
        %1050 = vmatpush2.msra.mxu0 0.0
        %1051 = vmatprep.subr.mxu0 0.0
        %1052 = vmatpush2.msra.mxu0 0.0
        %1053 = vmatprep.subr.mxu0 0.0
        %1054 = vmatpush2.msra.mxu0 0.0
        %1055 = vmatprep.subr.mxu0 0.0
        %1056 = vmatpush2.msra.mxu0 0.0
        %1057 = vmatprep.subr.mxu0 0.0
        %1058 = vmatpush2.msra.mxu0 0.0
        %1059 = vmatprep.subr.mxu0 0.0
        %1060 = vmatpush2.msra.mxu0 0.0
        %1061 = vmatprep.subr.mxu0 0.0
        %1062 = vmatpush2.msra.mxu0 0.0
        %1063 = vmatprep.subr.mxu0 0.0
        %1064 = vmatpush2.msra.mxu0 0.0
        %1065 = vmatprep.subr.mxu0 0.0
        %1066 = vmatpush2.msra.mxu0 0.0
        %1067 = vmatprep.mubr.f32.mxu0 0.0
        %1068 = vmatmul.mubr.f32.gmra.mxu0 %v842
        %v1069 = vpop.f32.mrf.mxu0
        %v1070 = vadd.f32 %v960, %v1069
        %v1071 = vpop.f32.mrf.mxu0
        %1072 = vmatprep.mubr.f32.mxu0 0.0
        %1073 = vmatmul.mubr.f32.gmra.mxu0 %v843
        %v1074 = vpop.f32.mrf.mxu0
        %v1075 = vadd.f32 %v965, %v1074
        %v1076 = vpop.f32.mrf.mxu0
        %1077 = vmatprep.mubr.f32.mxu0 0.0
        %1078 = vmatmul.mubr.f32.gmra.mxu0 %v844
        %v1079 = vpop.f32.mrf.mxu0
        %v1080 = vadd.f32 %v970, %v1079
        %v1081 = vpop.f32.mrf.mxu0
        %1082 = vmatprep.mubr.f32.mxu0 0.0
        %1083 = vmatmul.mubr.f32.gmra.mxu0 %v845
        %v1084 = vpop.f32.mrf.mxu0
        %v1085 = vadd.f32 %v975, %v1084
        %v1086 = vpop.f32.mrf.mxu0
        %1087 = vmatprep.mubr.f32.mxu0 0.0
        %1088 = vmatmul.mubr.f32.gmra.mxu0 %v846
        %v1089 = vpop.f32.mrf.mxu0
        %v1090 = vadd.f32 %v980, %v1089
        %v1091 = vpop.f32.mrf.mxu0
        %1092 = vmatprep.mubr.f32.mxu0 0.0
        %1093 = vmatmul.mubr.f32.gmra.mxu0 %v847
        %v1094 = vpop.f32.mrf.mxu0
        %v1095 = vadd.f32 %v985, %v1094
        %v1096 = vpop.f32.mrf.mxu0
        %1097 = vmatprep.mubr.f32.mxu0 0.0
        %1098 = vmatmul.mubr.f32.gmra.mxu0 %v848
        %v1099 = vpop.f32.mrf.mxu0
        %v1100 = vadd.f32 %v990, %v1099
        %v1101 = vpop.f32.mrf.mxu0
        %1102 = vmatprep.mubr.f32.mxu0 0.0
        %1103 = vmatmul.mubr.f32.gmra.mxu0 %v849
        %v1104 = vpop.f32.mrf.mxu0
        %v1105 = vadd.f32 %v995, %v1104
        %v1106 = vpop.f32.mrf.mxu0
        %1107 = vmatprep.mubr.f32.mxu0 0.0
        %1108 = vmatmul.mubr.f32.gmra.mxu0 %v850
        %v1109 = vpop.f32.mrf.mxu0
        %v1110 = vadd.f32 %v1000, %v1109
        %v1111 = vpop.f32.mrf.mxu0
        %1112 = vdwg.mxu0
        %v1113 = vld [vmem:[#allocation2 + $0x2] sm:$0xff]
        %v1114 = vld [vmem:[#allocation2 + $0xa] sm:$0xff]
        %v1115 = vld [vmem:[#allocation2 + $0x12] sm:$0xff]
        %v1116 = vld [vmem:[#allocation2 + $0x1a] sm:$0xff]
        %v1117 = vld [vmem:[#allocation2 + $0x22] sm:$0xff]
        %v1118 = vld [vmem:[#allocation2 + $0x2a] sm:$0xff]
        %v1119 = vld [vmem:[#allocation2 + $0x32] sm:$0xff]
        %v1120 = vld [vmem:[#allocation2 + $0x3a] sm:$0xff]
        %v1121 = vld [vmem:[#allocation2 + $0x42] sm:$0x3f]
        %s1122 = scalar_lea.vmem [#allocation8], 256
        %v1123 = vld [vmem:[%s1122] sm:$0xff]
        %v1124 = vld [vmem:[%s1122 + $0x8] sm:$0xff]
        %v1125 = vld [vmem:[%s1122 + $0x10] sm:$0xff]
        %v1126 = vld [vmem:[%s1122 + $0x18] sm:$0xff]
        %v1127 = vld [vmem:[%s1122 + $0x20] sm:$0xff]
        %v1128 = vld [vmem:[%s1122 + $0x28] sm:$0xff]
        %v1129 = vld [vmem:[%s1122 + $0x30] sm:$0xff]
        %v1130 = vld [vmem:[%s1122 + $0x38] sm:$0xff]
        %v1131 = vld [vmem:[%s1122 + $0x40] sm:$0xff]
        %v1132 = vld [vmem:[%s1122 + $0x48] sm:$0xff]
        %v1133 = vld [vmem:[%s1122 + $0x50] sm:$0xff]
        %v1134 = vld [vmem:[%s1122 + $0x58] sm:$0xff]
        %v1135 = vld [vmem:[%s1122 + $0x60] sm:$0xff]
        %v1136 = vld [vmem:[%s1122 + $0x68] sm:$0xff]
        %v1137 = vld [vmem:[%s1122 + $0x70] sm:$0xff]
        %v1138 = vld [vmem:[%s1122 + $0x78] sm:$0xff]
        %1139 = vmatprep.subr.mxu0 0.0
        %1140 = vmatpush1.msra.mxu0 %v1138
        %1141 = vmatprep.subr.mxu0 0.0
        %1142 = vmatpush1.msra.mxu0 %v1137
        %1143 = vmatprep.subr.mxu0 0.0
        %1144 = vmatpush1.msra.mxu0 %v1136
        %1145 = vmatprep.subr.mxu0 0.0
        %1146 = vmatpush1.msra.mxu0 %v1135
        %1147 = vmatprep.subr.mxu0 0.0
        %1148 = vmatpush1.msra.mxu0 %v1134
        %1149 = vmatprep.subr.mxu0 0.0
        %1150 = vmatpush1.msra.mxu0 %v1133
        %1151 = vmatprep.subr.mxu0 0.0
        %1152 = vmatpush1.msra.mxu0 %v1132
        %1153 = vmatprep.subr.mxu0 0.0
        %1154 = vmatpush1.msra.mxu0 %v1131
        %1155 = vmatprep.subr.mxu0 0.0
        %1156 = vmatpush1.msra.mxu0 %v1130
        %1157 = vmatprep.subr.mxu0 0.0
        %1158 = vmatpush1.msra.mxu0 %v1129
        %1159 = vmatprep.subr.mxu0 0.0
        %1160 = vmatpush1.msra.mxu0 %v1128
        %1161 = vmatprep.subr.mxu0 0.0
        %1162 = vmatpush1.msra.mxu0 %v1127
        %1163 = vmatprep.subr.mxu0 0.0
        %1164 = vmatpush1.msra.mxu0 %v1126
        %1165 = vmatprep.subr.mxu0 0.0
        %1166 = vmatpush1.msra.mxu0 %v1125
        %1167 = vmatprep.subr.mxu0 0.0
        %1168 = vmatpush1.msra.mxu0 %v1124
        %1169 = vmatprep.subr.mxu0 0.0
        %1170 = vmatpush1.msra.mxu0 %v1123
        %1171 = vmatprep.subr.mxu0 0.0
        %1172 = vmatpush2.msra.mxu0 0.0
        %1173 = vmatprep.subr.mxu0 0.0
        %1174 = vmatpush2.msra.mxu0 0.0
        %1175 = vmatprep.subr.mxu0 0.0
        %1176 = vmatpush2.msra.mxu0 0.0
        %1177 = vmatprep.subr.mxu0 0.0
        %1178 = vmatpush2.msra.mxu0 0.0
        %1179 = vmatprep.subr.mxu0 0.0
        %1180 = vmatpush2.msra.mxu0 0.0
        %1181 = vmatprep.subr.mxu0 0.0
        %1182 = vmatpush2.msra.mxu0 0.0
        %1183 = vmatprep.subr.mxu0 0.0
        %1184 = vmatpush2.msra.mxu0 0.0
        %1185 = vmatprep.subr.mxu0 0.0
        %1186 = vmatpush2.msra.mxu0 0.0
        %1187 = vmatprep.subr.mxu0 0.0
        %1188 = vmatpush2.msra.mxu0 0.0
        %1189 = vmatprep.subr.mxu0 0.0
        %1190 = vmatpush2.msra.mxu0 0.0
        %1191 = vmatprep.subr.mxu0 0.0
        %1192 = vmatpush2.msra.mxu0 0.0
        %1193 = vmatprep.subr.mxu0 0.0
        %1194 = vmatpush2.msra.mxu0 0.0
        %1195 = vmatprep.subr.mxu0 0.0
        %1196 = vmatpush2.msra.mxu0 0.0
        %1197 = vmatprep.subr.mxu0 0.0
        %1198 = vmatpush2.msra.mxu0 0.0
        %1199 = vmatprep.subr.mxu0 0.0
        %1200 = vmatpush2.msra.mxu0 0.0
        %1201 = vmatprep.subr.mxu0 0.0
        %1202 = vmatpush2.msra.mxu0 0.0
        %1203 = vmatprep.mubr.f32.mxu0 0.0
        %1204 = vmatmul.mubr.f32.gmra.mxu0 %v1113
        %v1205 = vpop.f32.mrf.mxu0
        %v1206 = vadd.f32 0.0, %v1205
        %v1207 = vpop.f32.mrf.mxu0
        %1208 = vmatprep.mubr.f32.mxu0 0.0
        %1209 = vmatmul.mubr.f32.gmra.mxu0 %v1114
        %v1210 = vpop.f32.mrf.mxu0
        %v1211 = vadd.f32 0.0, %v1210
        %v1212 = vpop.f32.mrf.mxu0
        %1213 = vmatprep.mubr.f32.mxu0 0.0
        %1214 = vmatmul.mubr.f32.gmra.mxu0 %v1115
        %v1215 = vpop.f32.mrf.mxu0
        %v1216 = vadd.f32 0.0, %v1215
        %v1217 = vpop.f32.mrf.mxu0
        %1218 = vmatprep.mubr.f32.mxu0 0.0
        %1219 = vmatmul.mubr.f32.gmra.mxu0 %v1116
        %v1220 = vpop.f32.mrf.mxu0
        %v1221 = vadd.f32 0.0, %v1220
        %v1222 = vpop.f32.mrf.mxu0
        %1223 = vmatprep.mubr.f32.mxu0 0.0
        %1224 = vmatmul.mubr.f32.gmra.mxu0 %v1117
        %v1225 = vpop.f32.mrf.mxu0
        %v1226 = vadd.f32 0.0, %v1225
        %v1227 = vpop.f32.mrf.mxu0
        %1228 = vmatprep.mubr.f32.mxu0 0.0
        %1229 = vmatmul.mubr.f32.gmra.mxu0 %v1118
        %v1230 = vpop.f32.mrf.mxu0
        %v1231 = vadd.f32 0.0, %v1230
        %v1232 = vpop.f32.mrf.mxu0
        %1233 = vmatprep.mubr.f32.mxu0 0.0
        %1234 = vmatmul.mubr.f32.gmra.mxu0 %v1119
        %v1235 = vpop.f32.mrf.mxu0
        %v1236 = vadd.f32 0.0, %v1235
        %v1237 = vpop.f32.mrf.mxu0
        %1238 = vmatprep.mubr.f32.mxu0 0.0
        %1239 = vmatmul.mubr.f32.gmra.mxu0 %v1120
        %v1240 = vpop.f32.mrf.mxu0
        %v1241 = vadd.f32 0.0, %v1240
        %v1242 = vpop.f32.mrf.mxu0
        %1243 = vmatprep.mubr.f32.mxu0 0.0
        %1244 = vmatmul.mubr.f32.gmra.mxu0 %v1121
        %v1245 = vpop.f32.mrf.mxu0
        %v1246 = vadd.f32 0.0, %v1245
        %v1247 = vpop.f32.mrf.mxu0
        %1248 = vdwg.mxu0
        %v1249 = vadd.f32 %v1070, %v1206
        %v1250 = vadd.f32 %v1075, %v1211
        %v1251 = vadd.f32 %v1080, %v1216
        %v1252 = vadd.f32 %v1085, %v1221
        %v1253 = vadd.f32 %v1090, %v1226
        %v1254 = vadd.f32 %v1095, %v1231
        %v1255 = vadd.f32 %v1100, %v1236
        %v1256 = vadd.f32 %v1105, %v1241
        %v1257 = vadd.f32 %v1110, %v1246
        %v1258 = vld [vmem:[%s5] sm:$0x1]
        %v1260 = vlaneseq
        %v1261 = vshrl.u32 %v1260, 7
        %v1262 = vsub.s32 0, %v1261
        %v1263 = vrot.slane %v1258, %v1262
        %v1265 = vmul.f32 %v1249, %v1263
        %v1266 = vmul.f32 %v1250, %v1263
        %v1267 = vmul.f32 %v1251, %v1263
        %v1268 = vmul.f32 %v1252, %v1263
        %v1269 = vmul.f32 %v1253, %v1263
        %v1270 = vmul.f32 %v1254, %v1263
        %v1271 = vmul.f32 %v1255, %v1263
        %v1272 = vmul.f32 %v1256, %v1263
        %v1273 = vmul.f32 %v1257, %v1263
        %v1274 = vld [vmem:[%s6] sm:$0x1]
        %v1276 = vlaneseq
        %v1277 = vshrl.u32 %v1276, 7
        %v1278 = vsub.s32 0, %v1277
        %v1279 = vrot.slane %v1274, %v1278
        %v1281 = vadd.f32 %v1265, %v1279
        %v1282 = vadd.f32 %v1266, %v1279
        %v1283 = vadd.f32 %v1267, %v1279
        %v1284 = vadd.f32 %v1268, %v1279
        %v1285 = vadd.f32 %v1269, %v1279
        %v1286 = vadd.f32 %v1270, %v1279
        %v1287 = vadd.f32 %v1271, %v1279
        %v1288 = vadd.f32 %v1272, %v1279
        %v1289 = vadd.f32 %v1273, %v1279
        %v1290 = vadd.f32 %v1281, %v380
        %v1291 = vadd.f32 %v1282, %v382
        %v1292 = vadd.f32 %v1283, %v384
        %v1293 = vadd.f32 %v1284, %v386
        %v1294 = vadd.f32 %v1285, %v388
        %v1295 = vadd.f32 %v1286, %v390
        %v1296 = vadd.f32 %v1287, %v392
        %v1297 = vadd.f32 %v1288, %v394
        %v1298 = vadd.f32 %v1289, %v393
        %v1299 = vmax.f32 %v1290, 0.0
        %v1300 = vmax.f32 %v1291, 0.0
        %v1301 = vmax.f32 %v1292, 0.0
        %v1302 = vmax.f32 %v1293, 0.0
        %v1303 = vmax.f32 %v1294, 0.0
        %v1304 = vmax.f32 %v1295, 0.0
        %v1305 = vmax.f32 %v1296, 0.0
        %v1306 = vmax.f32 %v1297, 0.0
        %v1307 = vmax.f32 %v1298, 0.0
        %1308 = vst [vmem:[%s325] sm:$0xff] %v1299
        %1309 = vst [vmem:[%s325 + $0x8] sm:$0xff] %v1300
        %1310 = vst [vmem:[%s325 + $0x10] sm:$0xff] %v1301
        %1311 = vst [vmem:[%s325 + $0x18] sm:$0xff] %v1302
        %1312 = vst [vmem:[%s325 + $0x20] sm:$0xff] %v1303
        %1313 = vst [vmem:[%s325 + $0x28] sm:$0xff] %v1304
        %1314 = vst [vmem:[%s325 + $0x30] sm:$0xff] %v1305
        %1315 = vst [vmem:[%s325 + $0x38] sm:$0xff] %v1306
        %1316 = vst [vmem:[%s325 + $0x40] sm:$0x3f] %v1307
        %1317 = vst [vmem:[%s325 + $0x46] sm:$0x3] 0.0
        %s1318 = sand.u32 %s185, 1
        %s1319 = scalar_lea.sflag [#allocation5], %s1318
        %s1320 = sand.u32 %s185, 1
        %s1321 = smul.addr %s1320, 72
        %s1322 = scalar_lea.vmem [#allocation9], %s1321
        // Predicated region
        $region61: #{tpu_custom_call.1} parent=47 // pred_check
          %p1323 = pneg %p195
        $region62: #{tpu_custom_call.1} parent=47 // pred_check_branch
          %1325 = sbr.rel (%p1323) target = $region64
        $region63: #{tpu_custom_call.1} parent=47 // pred_region
          %s1327 = ssub.s32 1152, 1152
          %1328 = vsyncadd %s1319, %s1327
          %s1329 = smul.addr %s25, 9
          %s1330 = smul.addr %s1329, 128
          %s1331 = scalar_lea.hbm %s7, %s1330
          %s1332 = sshll.u32 %s1322, 4
          %s1333 = int_to_ptr.vmem [resolvable:$true] %s1332
          %1338 = dma.vmem_to_hbm [thread:$0]  %s1333, 1152, %s1331, %s1319, 128, 128, 8
        $region64: #{tpu_custom_call.1} parent=47 // pred_fallthru
          _
      $region48: #{tpu_custom_call.1} parent=5 // pred_fallthru
        _
      %p1339 = scmp.le.s32.totalorder 2, %s20
      // Predicated region
      $region65: #{tpu_custom_call.1} parent=5 // pred_check
        %p1340 = pneg %p1339
      $region66: #{tpu_custom_call.1} parent=5 // pred_check_branch
        %1342 = sbr.rel (%p1340) target = $region68
      $region67: #{tpu_custom_call.1} parent=5 // pred_region
        %s1343 = ssub.s32 %s20, 2
        // Predicated region
        $region69: #{tpu_custom_call.1} parent=67 // pred_check
          %p1344 = pneg %p201
        $region70: #{tpu_custom_call.1} parent=67 // pred_check_branch
          %1346 = sbr.rel (%p1344) target = $region72
        $region71: #{tpu_custom_call.1} parent=67 // pred_region
          %s1347 = sand.u32 %s186, 1
          %s1348 = scalar_lea.sflag [#allocation5], %s1347
          %s1349 = sand.u32 %s186, 1
          %s1350 = smul.addr %s1349, 72
          %s1351 = scalar_lea.vmem [#allocation9], %s1350
          %1352 = dma.done %s1348, 1152
        $region72: #{tpu_custom_call.1} parent=67 // pred_fallthru
          _
      $region68: #{tpu_custom_call.1} parent=5 // pred_fallthru
        _
    $region6: #{tpu_custom_call.1} parent=1 // loop_footer
      %s24 = sadd.s32 1, %s20
    $region7: #{tpu_custom_call.1} parent=1 // loop_footer_branch
      %19 = sbr.rel target = $region3
    $region8: #{tpu_custom_call.1} parent=1 // loop_exit
      _
    %1353 = vsyncpa [#allocation4], 1
    %s1354 = scalar_lea.sflag [#allocation4], 1
    %1355 = vsyncpa %s1354, 1
    %1356 = vsyncpa [#allocation7], 1
    %1357 = vsyncpa [#allocation5], 1
    %s1358 = scalar_lea.sflag [#allocation5], 1
    %1359 = vsyncpa %s1358, 1

</llo_original>
